<compile_context>
chip_gen: v7x
topology: tpu7x:2x2x1
jax: 0.10.0
libtpu: 0.0.40
codegen_flags: <defaults>
</compile_context>

<pallas_src>
import functools

import jax
import jax.numpy as jnp
from jax import lax
from jax.experimental import pallas as pl
from jax.experimental.pallas import tpu as pltpu

_EPS = 1e-5


def _round_up(x, m):
    return (x + m - 1) // m * m


# ----------------------------------------------------------------------------
# Fused kernel: one batch element per grid step, everything stays in VMEM.
# ----------------------------------------------------------------------------
def _block_kernel(x_ref, w1_ref, b1_ref, w2_ref, b2_ref, w3_ref, b3_ref,
                  o_ref, y1p_ref, *, H, W, Cp):
    hw = H * W
    cin = x_ref.shape[-1]      # padded in-channels  (== padded out-channels)
    cout = o_ref.shape[-1]     # padded out-channels

    # ---- conv1 (1x1) + bn1 + relu (BN scale pre-folded into bf16 weights) ----
    # bf16 copy feeds the MXU; the f32 original is re-read only at the residual
    # add so its live range does not span the three matmuls.
    x_bf = x_ref[0].reshape(hw, cin).astype(jnp.bfloat16)
    y1 = jnp.dot(x_bf, w1_ref[...], preferred_element_type=jnp.float32)
    y1 = jnp.maximum(y1 + b1_ref[...], 0.0).astype(jnp.bfloat16)   # cast ONCE

    # ---- write conv1 result into the bf16 halo scratch -----------------------
    # Interior is fully overwritten every step; only the 1-pixel border must be
    # zero.  Re-zero the border per step (cheap, O(H+W) rows) instead of once
    # at program_id==0, so the kernel is correct even when the "parallel" batch
    # axis is split across TensorCores (each core has its own scratch and may
    # never execute grid step 0).
    # TODO(synk): row-only halo padding + pltpu.roll for the dx taps would make
    # the interior store fully sublane-aligned as well.
    zrow = jnp.zeros((1, W + 2, Cp), jnp.bfloat16)
    y1p_ref[0:1, :, :] = zrow
    y1p_ref[H + 1:H + 2, :, :] = zrow
    zcol = jnp.zeros((H, 1, Cp), jnp.bfloat16)
    y1p_ref[1:H + 1, 0:1, :] = zcol
    y1p_ref[1:H + 1, W + 1:W + 2, :] = zcol
    y1p_ref[1:H + 1, 1:W + 1, :] = y1.reshape(H, W, Cp)

    # ---- conv2 (3x3, stride 1, pad 1) + bn2 + relu ----------------------------
    # Nine accumulated MXU dots read straight from the halo: no materialized
    # (HW, 9*Cp) im2col patch, so no patch store + re-load through VMEM.
    # TODO(synk): on v6e/v7x a single deep-K matmul with densely packed
    # K = round_up(9*Cmid, 128) would feed the 256-deep MXU slightly better.
    acc = None
    for dy in range(3):
        for dx in range(3):
            t = dy * 3 + dx
            tap = y1p_ref[dy:dy + H, dx:dx + W, :].reshape(hw, Cp)
            prod = jnp.dot(tap, w2_ref[t * Cp:(t + 1) * Cp, :],
                           preferred_element_type=jnp.float32)
            acc = prod if acc is None else acc + prod
    y2 = jnp.maximum(acc + b2_ref[...], 0.0).astype(jnp.bfloat16)

    # ---- conv3 (1x1) + bn3 + residual add (exact f32 identity) + relu --------
    y3 = jnp.dot(y2, w3_ref[...], preferred_element_type=jnp.float32)
    identity = x_ref[0].reshape(hw, cin)     # fresh f32 read; short live range
    out = jnp.maximum(y3 + b3_ref[...] + identity, 0.0)
    o_ref[0] = out.reshape(H, W, cout).astype(o_ref.dtype)


def _vmem_limit_bytes(H, W, Cin_p, Cp, Cout_p):
    """Generation-aware VMEM limit with headroom for Mosaic internal scratch."""
    f32, bf16 = 4, 2
    hw = H * W
    act = 2 * hw * (Cin_p + Cout_p) * f32                     # double-buffered x / out blocks
    wts = 2 * ((Cin_p * Cp + 9 * Cp * Cp + Cp * Cout_p) * bf16
               + (2 * Cp + Cout_p) * f32)                     # weights + biases
    halo = (H + 2) * (W + 2) * Cp * bf16                      # bf16 halo scratch
    temps = hw * (3 * Cp + Cout_p) * f32 + 2 * hw * Cp * bf16  # in-kernel temporaries
    est = act + wts + halo + temps
    try:
        cap = int(pltpu.get_tpu_info().vmem_capacity_bytes)
    except Exception:
        cap = 64 * 2**20          # assume the most restrictive case (v7x per-core)
    clamp = max(cap - 24 * 2**20, 32 * 2**20)                 # ~40 MiB on v7x, ~104 MiB on v5e/v6e
    return int(min(max(est * 3 // 2, 16 * 2**20), clamp))


def bottleneck_block(x_nhwc, kp, *, c_out=None):
    """Fused Pallas forward of `Block` (stride=1, no identity_downsample).

    Input / output are NHWC float32; channels sit on the 128-lane axis.  If the
    channel count is < 128 (narrow demo shapes) it is zero-padded to 128 here so
    every in-kernel store/load and MXU dot stays lane-dense; real ResNet widths
    (>= 256) skip this path.
    """
    # TODO(synk): stride>1 / identity_downsample path not implemented (Block is
    # exercised with stride=1 so the residual add is shape-valid).
    # TODO(synk): add a second "parallel" row-tile grid axis (1-row halo) so
    # both v7x TensorCores get work at N=1 and large H*W*C fits 64 MiB VMEM.
    N, H, W, Cin = x_nhwc.shape
    Cin_p, Cp = kp["w1"].shape
    Cout_p = kp["w3"].shape[1]
    if c_out is None:
        c_out = Cout_p
    assert Cin == c_out, "identity residual requires in_channels == 4*out_channels"
    assert Cin_p == Cout_p

    if Cin < Cin_p:   # lane-dense padding for narrow channels (demo case only)
        x_nhwc = jnp.pad(x_nhwc, ((0, 0), (0, 0), (0, 0), (0, Cin_p - Cin)))

    kernel = functools.partial(_block_kernel, H=H, W=W, Cp=Cp)
    flops = 2 * N * H * W * (Cin_p * Cp + 9 * Cp * Cp + Cp * Cout_p)
    bytes_accessed = (4 * N * H * W * (Cin_p + Cout_p)
                      + 2 * (Cin_p * Cp + 9 * Cp * Cp + Cp * Cout_p)
                      + 4 * (2 * Cp + Cout_p))

    out = pl.pallas_call(
        kernel,
        out_shape=jax.ShapeDtypeStruct((N, H, W, Cout_p), x_nhwc.dtype),
        grid=(N,),
        in_specs=[
            pl.BlockSpec((1, H, W, Cin_p), lambda n: (n, 0, 0, 0)),  # activations
            # Weight / bias blocks: constant index_map -> DMA'd once, resident.
            # TODO(synk): single-buffer these (pipeline_mode=pl.Buffered(1)) to
            # halve their VMEM footprint once that matters for the shapes used.
            pl.BlockSpec((Cin_p, Cp), lambda n: (0, 0)),             # w1
            pl.BlockSpec((1, Cp), lambda n: (0, 0)),                 # b1
            pl.BlockSpec((9 * Cp, Cp), lambda n: (0, 0)),            # w2 (tap-major)
            pl.BlockSpec((1, Cp), lambda n: (0, 0)),                 # b2
            pl.BlockSpec((Cp, Cout_p), lambda n: (0, 0)),            # w3
            pl.BlockSpec((1, Cout_p), lambda n: (0, 0)),             # b3
        ],
        out_specs=pl.BlockSpec((1, H, W, Cout_p), lambda n: (n, 0, 0, 0)),
        scratch_shapes=[
            pltpu.VMEM((H + 2, W + 2, Cp), jnp.bfloat16),            # bf16 halo
        ],
        compiler_params=pltpu.CompilerParams(
            dimension_semantics=("parallel",),
            vmem_limit_bytes=_vmem_limit_bytes(H, W, Cin_p, Cp, Cout_p)),
        cost_estimate=pl.CostEstimate(flops=flops, transcendentals=0,
                                      bytes_accessed=bytes_accessed),
    )(x_nhwc, kp["w1"], kp["b1"], kp["w2"], kp["b2"], kp["w3"], kp["b3"])

    if c_out < Cout_p:
        out = out[..., :c_out]
    return out


def bottleneck_block_nchw(x_nchw, kp, *, c_out=None):
    """PyTorch NCHW convenience wrapper (hot path should stay NHWC)."""
    y = bottleneck_block(jnp.transpose(x_nchw, (0, 2, 3, 1)), kp, c_out=c_out)
    return jnp.transpose(y, (0, 3, 1, 2))


# ----------------------------------------------------------------------------
# Parameters (deterministic synthetic init) and BN-folding
# ----------------------------------------------------------------------------
def make_raw_params(key, in_ch, mid_ch):
    out_ch = 4 * mid_ch  # expansion = 4
    ks = jax.random.split(key, 18)
    n = lambda k, shape, s=0.1: s * jax.random.normal(k, shape, jnp.float32)
    return {
        "w1_oihw": n(ks[0], (mid_ch, in_ch, 1, 1)),
        "b1_conv": n(ks[1], (mid_ch,)),
        "g1": 1.0 + n(ks[2], (mid_ch,)), "be1": n(ks[3], (mid_ch,)),
        "m1": n(ks[4], (mid_ch,)), "v1": 0.5 + jnp.abs(n(ks[15], (mid_ch,))),
        "w2_oihw": n(ks[5], (mid_ch, mid_ch, 3, 3)),
        "b2_conv": n(ks[6], (mid_ch,)),
        "g2": 1.0 + n(ks[7], (mid_ch,)), "be2": n(ks[8], (mid_ch,)),
        "m2": n(ks[9], (mid_ch,)), "v2": 0.5 + jnp.abs(n(ks[16], (mid_ch,))),
        "w3_oihw": n(ks[10], (out_ch, mid_ch, 1, 1)),
        "b3_conv": n(ks[11], (out_ch,)),
        "g3": 1.0 + n(ks[12], (out_ch,)), "be3": n(ks[13], (out_ch,)),
        "m3": n(ks[14], (out_ch,)), "v3": 0.5 + jnp.abs(n(ks[17], (out_ch,))),
    }


def fold_params(p):
    """Fold conv bias + eval-mode BN into (weight, bias); fold the BN scale into
    the weights; pad every channel dimension to a multiple of 128 so all
    kernel-side slabs are lane-dense; cast weights to bf16 for the MXU.
    (If tighter accuracy is ever needed, apply the BN scale as an f32 per-column
    multiply on the f32 accumulator instead of folding it into bf16 weights.)"""
    def fold(b_conv, g, be, m, v):
        s = g / jnp.sqrt(v + _EPS)
        return s, (b_conv - m) * s + be

    Cmid = p["w1_oihw"].shape[0]
    Cin = p["w1_oihw"].shape[1]
    Cout = p["w3_oihw"].shape[0]
    Cp = _round_up(Cmid, 128)
    Cin_p = _round_up(Cin, 128)
    Cout_p = _round_up(Cout, 128)

    s1, b1 = fold(p["b1_conv"], p["g1"], p["be1"], p["m1"], p["v1"])
    s2, b2 = fold(p["b2_conv"], p["g2"], p["be2"], p["m2"], p["v2"])
    s3, b3 = fold(p["b3_conv"], p["g3"], p["be3"], p["m3"], p["v3"])

    # conv1 1x1: (Cin, Cmid) with BN scale folded, padded to (Cin_p, Cp).
    w1 = jnp.transpose(p["w1_oihw"][:, :, 0, 0], (1, 0)) * s1[None, :]
    w1 = jnp.pad(w1, ((0, Cin_p - Cin), (0, Cp - Cmid)))
    # conv2 3x3: HWIO with BN scale folded into out-channels, channel dims
    # padded to Cp, flattened tap-major (dy*3+dx) to (9*Cp, Cp).
    w2 = jnp.transpose(p["w2_oihw"], (2, 3, 1, 0)) * s2[None, None, None, :]
    w2 = jnp.pad(w2, ((0, 0), (0, 0), (0, Cp - Cmid), (0, Cp - Cmid)))
    w2 = w2.reshape(9 * Cp, Cp)
    # conv3 1x1: (Cmid, Cout) with BN scale folded, padded to (Cp, Cout_p).
    w3 = jnp.transpose(p["w3_oihw"][:, :, 0, 0], (1, 0)) * s3[None, :]
    w3 = jnp.pad(w3, ((0, Cp - Cmid), (0, Cout_p - Cout)))

    return {
        "w1": w1.astype(jnp.bfloat16),
        "w2": w2.astype(jnp.bfloat16),
        "w3": w3.astype(jnp.bfloat16),
        "b1": jnp.pad(b1, (0, Cp - Cmid)).reshape(1, Cp).astype(jnp.float32),
        "b2": jnp.pad(b2, (0, Cp - Cmid)).reshape(1, Cp).astype(jnp.float32),
        "b3": jnp.pad(b3, (0, Cout_p - Cout)).reshape(1, Cout_p).astype(jnp.float32),
    }


# ----------------------------------------------------------------------------
# Pure-JAX reference (torch semantics, eval-mode BN, NCHW, f32)
# ----------------------------------------------------------------------------
def reference_block(x, p):
    dn = ("NCHW", "OIHW", "NCHW")
    def bn(y, g, be, m, v):
        c = lambda a: a[None, :, None, None]
        return (y - c(m)) / jnp.sqrt(c(v) + _EPS) * c(g) + c(be)
    conv = lambda y, w, pad: lax.conv_general_dilated(
        y, w, (1, 1), pad, dimension_numbers=dn, precision=lax.Precision.HIGHEST)
    y = conv(x, p["w1_oihw"], "VALID") + p["b1_conv"][None, :, None, None]
    y = jax.nn.relu(bn(y, p["g1"], p["be1"], p["m1"], p["v1"]))
    y = conv(y, p["w2_oihw"], ((1, 1), (1, 1))) + p["b2_conv"][None, :, None, None]
    y = jax.nn.relu(bn(y, p["g2"], p["be2"], p["m2"], p["v2"]))
    y = conv(y, p["w3_oihw"], "VALID") + p["b3_conv"][None, :, None, None]
    y = bn(y, p["g3"], p["be3"], p["m3"], p["v3"])
    return jax.nn.relu(y + x)


if __name__ == "__main__":
    # Block(in_channels=32, out_channels=8, stride=1, identity_downsample=None):
    # the residual add requires in_channels == 4 * out_channels.
    N, H, W, Cin = 2, 8, 8, 32
    mid = 8
    key = jax.random.PRNGKey(0)
    kx, kparams_key = jax.random.split(key)
    x_nhwc = jax.random.normal(kx, (N, H, W, Cin), jnp.float32)

    raw = make_raw_params(kparams_key, Cin, mid)
    kparams = fold_params(raw)

    fwd = jax.jit(functools.partial(bottleneck_block, c_out=4 * mid))
    out = jax.block_until_ready(fwd(x_nhwc, kparams))

    # Reference runs in NCHW / f32; transposes here are test-harness only.
    x_nchw = jnp.transpose(x_nhwc, (0, 3, 1, 2))
    ref = jnp.transpose(reference_block(x_nchw, raw), (0, 2, 3, 1))
    ref = jax.block_until_ready(ref)

    assert out.shape == (N, H, W, 4 * mid), out.shape
    # bf16 MXU operands (f32 accumulation) -> slightly looser tolerance vs f32 ref.
    assert jnp.allclose(out, ref, atol=5e-2, rtol=5e-2), \
        float(jnp.max(jnp.abs(out - ref)))
    print("KERNEL_OK")
</pallas_src>

<mosaic_0001>
module attributes {stable_mosaic.version = 11 : i64} {
  func.func @_block_kernel(%arg0: i32, %arg1: memref<1x8x8x128xf32, #tpu.memory_space<vmem>>, %arg2: memref<128x128xbf16, #tpu.memory_space<vmem>>, %arg3: memref<1x128xf32, #tpu.memory_space<vmem>>, %arg4: memref<1152x128xbf16, #tpu.memory_space<vmem>>, %arg5: memref<1x128xf32, #tpu.memory_space<vmem>>, %arg6: memref<128x128xbf16, #tpu.memory_space<vmem>>, %arg7: memref<1x128xf32, #tpu.memory_space<vmem>>, %arg8: memref<1x8x8x128xf32, #tpu.memory_space<vmem>>, %arg9: memref<10x10x128xbf16, #tpu.memory_space<vmem>>) attributes {dimension_semantics = [#tpu.dimension_semantics<parallel>], iteration_bounds = array<i64: 2>, scalar_prefetch = 0 : i64, scratch_operands = 1 : i64, tpu.core_type = #tpu.core_type<tc>, window_params = [{transform_indices = @transform_0, window_bounds = array<i64: 1, 8, 8, 128>}, {pipeline_mode = #tpu.pipeline_mode<synchronous>, transform_indices = @transform_1, window_bounds = array<i64: 128, 128>}, {pipeline_mode = #tpu.pipeline_mode<synchronous>, transform_indices = @transform_2, window_bounds = array<i64: 1, 128>}, {pipeline_mode = #tpu.pipeline_mode<synchronous>, transform_indices = @transform_3, window_bounds = array<i64: 1152, 128>}, {pipeline_mode = #tpu.pipeline_mode<synchronous>, transform_indices = @transform_4, window_bounds = array<i64: 1, 128>}, {pipeline_mode = #tpu.pipeline_mode<synchronous>, transform_indices = @transform_5, window_bounds = array<i64: 128, 128>}, {pipeline_mode = #tpu.pipeline_mode<synchronous>, transform_indices = @transform_6, window_bounds = array<i64: 1, 128>}, {transform_indices = @transform_7, window_bounds = array<i64: 1, 8, 8, 128>}]} {
    %c0 = arith.constant 0 : index
    %c0_0 = arith.constant 0 : index
    %c0_1 = arith.constant 0 : index
    %c0_2 = arith.constant 0 : index
    %0 = vector.load %arg1[%c0, %c0_0, %c0_1, %c0_2] : memref<1x8x8x128xf32, #tpu.memory_space<vmem>>, vector<1x8x8x128xf32>
    %1 = vector.shape_cast %0 : vector<1x8x8x128xf32> to vector<8x8x128xf32>
    %2 = vector.shape_cast %1 : vector<8x8x128xf32> to vector<64x128xf32>
    %3 = arith.truncf %2 : vector<64x128xf32> to vector<64x128xbf16>
    %c0_3 = arith.constant 0 : index
    %c0_4 = arith.constant 0 : index
    %4 = vector.load %arg2[%c0_3, %c0_4] : memref<128x128xbf16, #tpu.memory_space<vmem>>, vector<128x128xbf16>
    %cst = arith.constant dense<0.000000e+00> : vector<64x128xf32>
    %5 = tpu.matmul %3, %4, %cst {dimension_numbers = #tpu.dot_dimension_numbers<[1], [0], [0], [1], [0, 0, 1, 1], [], []>} : vector<64x128xbf16>, vector<128x128xbf16>, vector<64x128xf32> -> vector<64x128xf32>
    %c0_5 = arith.constant 0 : index
    %c0_6 = arith.constant 0 : index
    %6 = vector.load %arg3[%c0_5, %c0_6] : memref<1x128xf32, #tpu.memory_space<vmem>>, vector<1x128xf32>
    %7 = vector.broadcast %6 : vector<1x128xf32> to vector<64x128xf32>
    %8 = arith.addf %5, %7 : vector<64x128xf32>
    %cst_7 = arith.constant 0.000000e+00 : f32
    %9 = vector.broadcast %cst_7 : f32 to vector<64x128xf32>
    %10 = arith.maximumf %8, %9 : vector<64x128xf32>
    %11 = arith.truncf %10 : vector<64x128xf32> to vector<64x128xbf16>
    %cst_8 = arith.constant 0.000000e+00 : bf16
    %12 = vector.broadcast %cst_8 : bf16 to vector<1x10x128xbf16>
    %c0_9 = arith.constant 0 : index
    %c0_10 = arith.constant 0 : index
    %c0_11 = arith.constant 0 : index
    %13 = vector.load %arg9[%c0_9, %c0_10, %c0_11] : memref<10x10x128xbf16, #tpu.memory_space<vmem>>, vector<1x10x128xbf16>
    tpu.vector_store %arg9[%c0_9, %c0_10, %c0_11], %12 {strides = array<i32>} : memref<10x10x128xbf16, #tpu.memory_space<vmem>>, vector<1x10x128xbf16>,
    %c9 = arith.constant 9 : index
    %c0_12 = arith.constant 0 : index
    %c0_13 = arith.constant 0 : index
    %14 = vector.load %arg9[%c9, %c0_12, %c0_13] : memref<10x10x128xbf16, #tpu.memory_space<vmem>>, vector<1x10x128xbf16>
    tpu.vector_store %arg9[%c9, %c0_12, %c0_13], %12 {strides = array<i32>} : memref<10x10x128xbf16, #tpu.memory_space<vmem>>, vector<1x10x128xbf16>,
    %cst_14 = arith.constant 0.000000e+00 : bf16
    %15 = vector.broadcast %cst_14 : bf16 to vector<8x1x128xbf16>
    %c1 = arith.constant 1 : index
    %c0_15 = arith.constant 0 : index
    %c0_16 = arith.constant 0 : index
    %16 = vector.load %arg9[%c1, %c0_15, %c0_16] : memref<10x10x128xbf16, #tpu.memory_space<vmem>>, vector<8x1x128xbf16>
    tpu.vector_store %arg9[%c1, %c0_15, %c0_16], %15 {strides = array<i32>} : memref<10x10x128xbf16, #tpu.memory_space<vmem>>, vector<8x1x128xbf16>,
    %c1_17 = arith.constant 1 : index
    %c9_18 = arith.constant 9 : index
    %c0_19 = arith.constant 0 : index
    %17 = vector.load %arg9[%c1_17, %c9_18, %c0_19] : memref<10x10x128xbf16, #tpu.memory_space<vmem>>, vector<8x1x128xbf16>
    tpu.vector_store %arg9[%c1_17, %c9_18, %c0_19], %15 {strides = array<i32>} : memref<10x10x128xbf16, #tpu.memory_space<vmem>>, vector<8x1x128xbf16>,
    %18 = vector.shape_cast %11 : vector<64x128xbf16> to vector<8x8x128xbf16>
    %c1_20 = arith.constant 1 : index
    %c1_21 = arith.constant 1 : index
    %c0_22 = arith.constant 0 : index
    %19 = vector.load %arg9[%c1_20, %c1_21, %c0_22] : memref<10x10x128xbf16, #tpu.memory_space<vmem>>, vector<8x8x128xbf16>
    tpu.vector_store %arg9[%c1_20, %c1_21, %c0_22], %18 {strides = array<i32>} : memref<10x10x128xbf16, #tpu.memory_space<vmem>>, vector<8x8x128xbf16>,
    %c0_23 = arith.constant 0 : index
    %c0_24 = arith.constant 0 : index
    %c0_25 = arith.constant 0 : index
    %20 = vector.load %arg9[%c0_23, %c0_24, %c0_25] : memref<10x10x128xbf16, #tpu.memory_space<vmem>>, vector<8x8x128xbf16>
    %21 = vector.shape_cast %20 : vector<8x8x128xbf16> to vector<64x128xbf16>
    %c0_26 = arith.constant 0 : index
    %c0_27 = arith.constant 0 : index
    %22 = vector.load %arg4[%c0_26, %c0_27] : memref<1152x128xbf16, #tpu.memory_space<vmem>>, vector<128x128xbf16>
    %cst_28 = arith.constant dense<0.000000e+00> : vector<64x128xf32>
    %23 = tpu.matmul %21, %22, %cst_28 {dimension_numbers = #tpu.dot_dimension_numbers<[1], [0], [0], [1], [0, 0, 1, 1], [], []>} : vector<64x128xbf16>, vector<128x128xbf16>, vector<64x128xf32> -> vector<64x128xf32>
    %c0_29 = arith.constant 0 : index
    %c1_30 = arith.constant 1 : index
    %c0_31 = arith.constant 0 : index
    %24 = vector.load %arg9[%c0_29, %c1_30, %c0_31] : memref<10x10x128xbf16, #tpu.memory_space<vmem>>, vector<8x8x128xbf16>
    %25 = vector.shape_cast %24 : vector<8x8x128xbf16> to vector<64x128xbf16>
    %c128 = arith.constant 128 : index
    %c0_32 = arith.constant 0 : index
    %26 = vector.load %arg4[%c128, %c0_32] : memref<1152x128xbf16, #tpu.memory_space<vmem>>, vector<128x128xbf16>
    %cst_33 = arith.constant dense<0.000000e+00> : vector<64x128xf32>
    %27 = tpu.matmul %25, %26, %cst_33 {dimension_numbers = #tpu.dot_dimension_numbers<[1], [0], [0], [1], [0, 0, 1, 1], [], []>} : vector<64x128xbf16>, vector<128x128xbf16>, vector<64x128xf32> -> vector<64x128xf32>
    %28 = arith.addf %23, %27 : vector<64x128xf32>
    %c0_34 = arith.constant 0 : index
    %c2 = arith.constant 2 : index
    %c0_35 = arith.constant 0 : index
    %29 = vector.load %arg9[%c0_34, %c2, %c0_35] : memref<10x10x128xbf16, #tpu.memory_space<vmem>>, vector<8x8x128xbf16>
    %30 = vector.shape_cast %29 : vector<8x8x128xbf16> to vector<64x128xbf16>
    %c256 = arith.constant 256 : index
    %c0_36 = arith.constant 0 : index
    %31 = vector.load %arg4[%c256, %c0_36] : memref<1152x128xbf16, #tpu.memory_space<vmem>>, vector<128x128xbf16>
    %cst_37 = arith.constant dense<0.000000e+00> : vector<64x128xf32>
    %32 = tpu.matmul %30, %31, %cst_37 {dimension_numbers = #tpu.dot_dimension_numbers<[1], [0], [0], [1], [0, 0, 1, 1], [], []>} : vector<64x128xbf16>, vector<128x128xbf16>, vector<64x128xf32> -> vector<64x128xf32>
    %33 = arith.addf %28, %32 : vector<64x128xf32>
    %c1_38 = arith.constant 1 : index
    %c0_39 = arith.constant 0 : index
    %c0_40 = arith.constant 0 : index
    %34 = vector.load %arg9[%c1_38, %c0_39, %c0_40] : memref<10x10x128xbf16, #tpu.memory_space<vmem>>, vector<8x8x128xbf16>
    %35 = vector.shape_cast %34 : vector<8x8x128xbf16> to vector<64x128xbf16>
    %c384 = arith.constant 384 : index
    %c0_41 = arith.constant 0 : index
    %36 = vector.load %arg4[%c384, %c0_41] : memref<1152x128xbf16, #tpu.memory_space<vmem>>, vector<128x128xbf16>
    %cst_42 = arith.constant dense<0.000000e+00> : vector<64x128xf32>
    %37 = tpu.matmul %35, %36, %cst_42 {dimension_numbers = #tpu.dot_dimension_numbers<[1], [0], [0], [1], [0, 0, 1, 1], [], []>} : vector<64x128xbf16>, vector<128x128xbf16>, vector<64x128xf32> -> vector<64x128xf32>
    %38 = arith.addf %33, %37 : vector<64x128xf32>
    %c1_43 = arith.constant 1 : index
    %c1_44 = arith.constant 1 : index
    %c0_45 = arith.constant 0 : index
    %39 = vector.load %arg9[%c1_43, %c1_44, %c0_45] : memref<10x10x128xbf16, #tpu.memory_space<vmem>>, vector<8x8x128xbf16>
    %40 = vector.shape_cast %39 : vector<8x8x128xbf16> to vector<64x128xbf16>
    %c512 = arith.constant 512 : index
    %c0_46 = arith.constant 0 : index
    %41 = vector.load %arg4[%c512, %c0_46] : memref<1152x128xbf16, #tpu.memory_space<vmem>>, vector<128x128xbf16>
    %cst_47 = arith.constant dense<0.000000e+00> : vector<64x128xf32>
    %42 = tpu.matmul %40, %41, %cst_47 {dimension_numbers = #tpu.dot_dimension_numbers<[1], [0], [0], [1], [0, 0, 1, 1], [], []>} : vector<64x128xbf16>, vector<128x128xbf16>, vector<64x128xf32> -> vector<64x128xf32>
    %43 = arith.addf %38, %42 : vector<64x128xf32>
    %c1_48 = arith.constant 1 : index
    %c2_49 = arith.constant 2 : index
    %c0_50 = arith.constant 0 : index
    %44 = vector.load %arg9[%c1_48, %c2_49, %c0_50] : memref<10x10x128xbf16, #tpu.memory_space<vmem>>, vector<8x8x128xbf16>
    %45 = vector.shape_cast %44 : vector<8x8x128xbf16> to vector<64x128xbf16>
    %c640 = arith.constant 640 : index
    %c0_51 = arith.constant 0 : index
    %46 = vector.load %arg4[%c640, %c0_51] : memref<1152x128xbf16, #tpu.memory_space<vmem>>, vector<128x128xbf16>
    %cst_52 = arith.constant dense<0.000000e+00> : vector<64x128xf32>
    %47 = tpu.matmul %45, %46, %cst_52 {dimension_numbers = #tpu.dot_dimension_numbers<[1], [0], [0], [1], [0, 0, 1, 1], [], []>} : vector<64x128xbf16>, vector<128x128xbf16>, vector<64x128xf32> -> vector<64x128xf32>
    %48 = arith.addf %43, %47 : vector<64x128xf32>
    %c2_53 = arith.constant 2 : index
    %c0_54 = arith.constant 0 : index
    %c0_55 = arith.constant 0 : index
    %49 = vector.load %arg9[%c2_53, %c0_54, %c0_55] : memref<10x10x128xbf16, #tpu.memory_space<vmem>>, vector<8x8x128xbf16>
    %50 = vector.shape_cast %49 : vector<8x8x128xbf16> to vector<64x128xbf16>
    %c768 = arith.constant 768 : index
    %c0_56 = arith.constant 0 : index
    %51 = vector.load %arg4[%c768, %c0_56] : memref<1152x128xbf16, #tpu.memory_space<vmem>>, vector<128x128xbf16>
    %cst_57 = arith.constant dense<0.000000e+00> : vector<64x128xf32>
    %52 = tpu.matmul %50, %51, %cst_57 {dimension_numbers = #tpu.dot_dimension_numbers<[1], [0], [0], [1], [0, 0, 1, 1], [], []>} : vector<64x128xbf16>, vector<128x128xbf16>, vector<64x128xf32> -> vector<64x128xf32>
    %53 = arith.addf %48, %52 : vector<64x128xf32>
    %c2_58 = arith.constant 2 : index
    %c1_59 = arith.constant 1 : index
    %c0_60 = arith.constant 0 : index
    %54 = vector.load %arg9[%c2_58, %c1_59, %c0_60] : memref<10x10x128xbf16, #tpu.memory_space<vmem>>, vector<8x8x128xbf16>
    %55 = vector.shape_cast %54 : vector<8x8x128xbf16> to vector<64x128xbf16>
    %c896 = arith.constant 896 : index
    %c0_61 = arith.constant 0 : index
    %56 = vector.load %arg4[%c896, %c0_61] : memref<1152x128xbf16, #tpu.memory_space<vmem>>, vector<128x128xbf16>
    %cst_62 = arith.constant dense<0.000000e+00> : vector<64x128xf32>
    %57 = tpu.matmul %55, %56, %cst_62 {dimension_numbers = #tpu.dot_dimension_numbers<[1], [0], [0], [1], [0, 0, 1, 1], [], []>} : vector<64x128xbf16>, vector<128x128xbf16>, vector<64x128xf32> -> vector<64x128xf32>
    %58 = arith.addf %53, %57 : vector<64x128xf32>
    %c2_63 = arith.constant 2 : index
    %c2_64 = arith.constant 2 : index
    %c0_65 = arith.constant 0 : index
    %59 = vector.load %arg9[%c2_63, %c2_64, %c0_65] : memref<10x10x128xbf16, #tpu.memory_space<vmem>>, vector<8x8x128xbf16>
    %60 = vector.shape_cast %59 : vector<8x8x128xbf16> to vector<64x128xbf16>
    %c1024 = arith.constant 1024 : index
    %c0_66 = arith.constant 0 : index
    %61 = vector.load %arg4[%c1024, %c0_66] : memref<1152x128xbf16, #tpu.memory_space<vmem>>, vector<128x128xbf16>
    %cst_67 = arith.constant dense<0.000000e+00> : vector<64x128xf32>
    %62 = tpu.matmul %60, %61, %cst_67 {dimension_numbers = #tpu.dot_dimension_numbers<[1], [0], [0], [1], [0, 0, 1, 1], [], []>} : vector<64x128xbf16>, vector<128x128xbf16>, vector<64x128xf32> -> vector<64x128xf32>
    %63 = arith.addf %58, %62 : vector<64x128xf32>
    %c0_68 = arith.constant 0 : index
    %c0_69 = arith.constant 0 : index
    %64 = vector.load %arg5[%c0_68, %c0_69] : memref<1x128xf32, #tpu.memory_space<vmem>>, vector<1x128xf32>
    %65 = vector.broadcast %64 : vector<1x128xf32> to vector<64x128xf32>
    %66 = arith.addf %63, %65 : vector<64x128xf32>
    %cst_70 = arith.constant 0.000000e+00 : f32
    %67 = vector.broadcast %cst_70 : f32 to vector<64x128xf32>
    %68 = arith.maximumf %66, %67 : vector<64x128xf32>
    %69 = arith.truncf %68 : vector<64x128xf32> to vector<64x128xbf16>
    %c0_71 = arith.constant 0 : index
    %c0_72 = arith.constant 0 : index
    %70 = vector.load %arg6[%c0_71, %c0_72] : memref<128x128xbf16, #tpu.memory_space<vmem>>, vector<128x128xbf16>
    %cst_73 = arith.constant dense<0.000000e+00> : vector<64x128xf32>
    %71 = tpu.matmul %69, %70, %cst_73 {dimension_numbers = #tpu.dot_dimension_numbers<[1], [0], [0], [1], [0, 0, 1, 1], [], []>} : vector<64x128xbf16>, vector<128x128xbf16>, vector<64x128xf32> -> vector<64x128xf32>
    %c0_74 = arith.constant 0 : index
    %c0_75 = arith.constant 0 : index
    %c0_76 = arith.constant 0 : index
    %c0_77 = arith.constant 0 : index
    %72 = vector.load %arg1[%c0_74, %c0_75, %c0_76, %c0_77] : memref<1x8x8x128xf32, #tpu.memory_space<vmem>>, vector<1x8x8x128xf32>
    %73 = vector.shape_cast %72 : vector<1x8x8x128xf32> to vector<8x8x128xf32>
    %74 = vector.shape_cast %73 : vector<8x8x128xf32> to vector<64x128xf32>
    %c0_78 = arith.constant 0 : index
    %c0_79 = arith.constant 0 : index
    %75 = vector.load %arg7[%c0_78, %c0_79] : memref<1x128xf32, #tpu.memory_space<vmem>>, vector<1x128xf32>
    %76 = vector.broadcast %75 : vector<1x128xf32> to vector<64x128xf32>
    %77 = arith.addf %71, %76 : vector<64x128xf32>
    %78 = arith.addf %77, %74 : vector<64x128xf32>
    %cst_80 = arith.constant 0.000000e+00 : f32
    %79 = vector.broadcast %cst_80 : f32 to vector<64x128xf32>
    %80 = arith.maximumf %78, %79 : vector<64x128xf32>
    %81 = vector.shape_cast %80 : vector<64x128xf32> to vector<8x8x128xf32>
    %c0_81 = arith.constant 0 : index
    %c0_82 = arith.constant 0 : index
    %c0_83 = arith.constant 0 : index
    %c0_84 = arith.constant 0 : index
    %82 = vector.load %arg8[%c0_81, %c0_82, %c0_83, %c0_84] : memref<1x8x8x128xf32, #tpu.memory_space<vmem>>, vector<1x8x8x128xf32>
    %83 = vector.shape_cast %82 : vector<1x8x8x128xf32> to vector<8x8x128xf32>
    %84 = vector.shape_cast %81 : vector<8x8x128xf32> to vector<1x8x8x128xf32>
    tpu.vector_store %arg8[%c0_81, %c0_82, %c0_83, %c0_84], %84 {strides = array<i32>} : memref<1x8x8x128xf32, #tpu.memory_space<vmem>>, vector<1x8x8x128xf32>,
    return
  }
  func.func @transform_0(%arg0: i32) -> (i32, i32, i32, i32) {
    %c0_i32 = arith.constant 0 : i32
    %c0_i32_0 = arith.constant 0 : i32
    %c0_i32_1 = arith.constant 0 : i32
    %c0_i32_2 = arith.constant 0 : i32
    return %arg0, %c0_i32, %c0_i32_0, %c0_i32_1 : i32, i32, i32, i32
  }
  func.func @transform_1(%arg0: i32) -> (i32, i32) {
    %c0_i32 = arith.constant 0 : i32
    %c0_i32_0 = arith.constant 0 : i32
    %c0_i32_1 = arith.constant 0 : i32
    return %c0_i32, %c0_i32_0 : i32, i32
  }
  func.func @transform_2(%arg0: i32) -> (i32, i32) {
    %c0_i32 = arith.constant 0 : i32
    %c0_i32_0 = arith.constant 0 : i32
    %c0_i32_1 = arith.constant 0 : i32
    return %c0_i32, %c0_i32_0 : i32, i32
  }
  func.func @transform_3(%arg0: i32) -> (i32, i32) {
    %c0_i32 = arith.constant 0 : i32
    %c0_i32_0 = arith.constant 0 : i32
    %c0_i32_1 = arith.constant 0 : i32
    return %c0_i32, %c0_i32_0 : i32, i32
  }
  func.func @transform_4(%arg0: i32) -> (i32, i32) {
    %c0_i32 = arith.constant 0 : i32
    %c0_i32_0 = arith.constant 0 : i32
    %c0_i32_1 = arith.constant 0 : i32
    return %c0_i32, %c0_i32_0 : i32, i32
  }
  func.func @transform_5(%arg0: i32) -> (i32, i32) {
    %c0_i32 = arith.constant 0 : i32
    %c0_i32_0 = arith.constant 0 : i32
    %c0_i32_1 = arith.constant 0 : i32
    return %c0_i32, %c0_i32_0 : i32, i32
  }
  func.func @transform_6(%arg0: i32) -> (i32, i32) {
    %c0_i32 = arith.constant 0 : i32
    %c0_i32_0 = arith.constant 0 : i32
    %c0_i32_1 = arith.constant 0 : i32
    return %c0_i32, %c0_i32_0 : i32, i32
  }
  func.func @transform_7(%arg0: i32) -> (i32, i32, i32, i32) {
    %c0_i32 = arith.constant 0 : i32
    %c0_i32_0 = arith.constant 0 : i32
    %c0_i32_1 = arith.constant 0 : i32
    %c0_i32_2 = arith.constant 0 : i32
    return %arg0, %c0_i32, %c0_i32_0, %c0_i32_1 : i32, i32, i32, i32
  }
}

</mosaic_0001>

<llo_original>
// kernel: bottleneck_block.1
$region0: #{bottleneck_block.1}
  #allocation0 [shape = 'u32[]', space=smem, size = 0x4, offset = 0x4, fixed_abs, tag = 'smem constant byte address 0x4 - core index']
  #allocation1 [shape = 'u32[144,128]{1,0:T(1,128)}', space=vmem, size = 0x12000, scoped, tag = 'internal scratch']
  #allocation2 [shape = 'bf16[10,10,128]{2,1,0:T(8,128)(2,1)}', space=vmem, size = 0xa000, scoped, tag = 'scratch operand']
  %s0 = inlined_call_operand.vmem [shape: f32[2,8,8,128], index: 0, kind: input, shape index: {}]
  %s1 = inlined_call_operand.vmem [shape: bf16[128,128], index: 1, kind: input, shape index: {}]
  %s2 = inlined_call_operand.vmem [shape: f32[1,128], index: 2, kind: input, shape index: {}]
  %s3 = inlined_call_operand.hbm [shape: bf16[1152,128], index: 3, kind: input, shape index: {}]
  %s4 = inlined_call_operand.vmem [shape: f32[1,128], index: 4, kind: input, shape index: {}]
  %s5 = inlined_call_operand.vmem [shape: bf16[128,128], index: 5, kind: input, shape index: {}]
  %s6 = inlined_call_operand.vmem [shape: f32[1,128], index: 6, kind: input, shape index: {}]
  %s7 = inlined_call_operand.hbm [shape: f32[2,8,8,128], index: 7, kind: output, shape index: {}]
  %s8 = sld [smem:[#allocation0]]
  $region65: #{bottleneck_block.1} parent=0
    _
  %s10 = ssub.s32 1, %s8
  %s11 = scalar_select 0, %s10, %s8
  $region1: #{bottleneck_block.1} parent=0
    #allocation3 [shape = 'u8[294912]{0}', space=vmem, size = 0x48000, scoped, tag = 'input window, operand 3, single buffered']
    #allocation4 [shape = 's32[2]{0}', space=sflag, size = 0x8, scoped, tag = 'scoped memory for bottleneck_block.1']
    #allocation5 [shape = 's32[2]{0}', space=sflag, size = 0x8, scoped, tag = 'scoped memory for bottleneck_block.1']
    #allocation6 [shape = 'u8[65536]{0}', space=vmem, size = 0x10000, scoped, tag = 'output window, operand 0']
    %12 = vsyncpa [#allocation4], 0
    %13 = vsyncpa [#allocation5], 0
    %s14 = scalar_lea.sflag [#allocation5], 1
    %15 = vsyncpa %s14, 0
    loop: start=0, step=1, limit=4
    $region2: #{bottleneck_block.1} parent=1 // loop_pre_header
      _
    $region3: #{bottleneck_block.1} parent=1 // loop_header
      %s17 = sphi 0, %s21
      %p18 = scmp.ge.s32.totalorder %s17, 4
      %s27 = sphi 0, %s29
      %s30 = sphi 0, %s27
      %s31 = sphi 0, %s30
      %s47 = sphi 0, %s31
      %s51 = sphi 0, %s51
      %s53 = sphi 0, %s51
      %s54 = sphi 0, %s53
      %s68 = sphi 0, %s54
      %s72 = sphi 0, %s72
      %s74 = sphi 0, %s72
      %s75 = sphi 0, %s74
      %s89 = sphi 0, %s75
      %s93 = sphi 0, %s93
      %s95 = sphi 0, %s93
      %s96 = sphi 0, %s95
      %s110 = sphi 0, %s96
      %s114 = sphi 0, %s114
      %s116 = sphi 0, %s114
      %s117 = sphi 0, %s116
      %s131 = sphi 0, %s117
      %s135 = sphi 0, %s135
      %s137 = sphi 0, %s135
      %s138 = sphi 0, %s137
      %s152 = sphi 0, %s138
      %s156 = sphi 0, %s156
      %s158 = sphi 0, %s156
      %s159 = sphi 0, %s158
      %s173 = sphi 0, %s159
      %s179 = sphi 0, %s181
      %s182 = sphi 0, %s179
      %s183 = sphi 0, %s182
      %s199 = sphi 0, %s183
    $region4: #{bottleneck_block.1} parent=1 // loop_header_branch
      %20 = sbr.rel (%p18) target = $region8
    $region5: #{bottleneck_block.1} parent=1 // loop_body
      %s22 = ssub.s32 %s17, 1
      %s23 = ssub.s32 %s17, 2
      %s24 = sadd.s32 %s17, 1
      %s25 = ssub.s32 %s17, %s24
      %p26 = scmp.eq.s32.totalorder %s25, 0
      %s28 = sadd.s32 %s27, 1
      %s29 = scalar_select %p26, %s27, %s28
      %p32 = pneg %p26
      %p33 = scmp.eq.s32.totalorder %s17, 1
      %p34 = por %p32, %p33
      %p35 = scmp.ne.s32.totalorder %s27, %s30
      %p36 = scmp.eq.s32.totalorder %s17, 0
      %p37 = por %p35, %p36
      %p38 = scmp.ne.s32.totalorder %s27, %s30
      %p39 = scmp.eq.s32.totalorder %s22, 1
      %p40 = por %p38, %p39
      %p41 = scmp.ne.s32.totalorder %s30, %s31
      %p42 = scmp.eq.s32.totalorder %s22, 0
      %p43 = por %p41, %p42
      %p44 = scmp.ne.s32.totalorder %s30, %s31
      %p45 = scmp.eq.s32.totalorder %s23, 1
      %p46 = por %p44, %p45
      %p48 = scmp.ne.s32.totalorder %s31, %s47
      %p49 = scmp.eq.s32.totalorder %s23, 0
      %p50 = por %p48, %p49
      %s52 = sadd.s32 %s51, 1
      %p55 = scmp.eq.s32.totalorder %s17, 1
      %p56 = scmp.ne.s32.totalorder %s51, %s53
      %p57 = scmp.eq.s32.totalorder %s17, 0
      %p58 = por %p56, %p57
      %p59 = scmp.ne.s32.totalorder %s51, %s53
      %p60 = scmp.eq.s32.totalorder %s22, 1
      %p61 = por %p59, %p60
      %p62 = scmp.ne.s32.totalorder %s53, %s54
      %p63 = scmp.eq.s32.totalorder %s22, 0
      %p64 = por %p62, %p63
      %p65 = scmp.ne.s32.totalorder %s53, %s54
      %p66 = scmp.eq.s32.totalorder %s23, 1
      %p67 = por %p65, %p66
      %p69 = scmp.ne.s32.totalorder %s54, %s68
      %p70 = scmp.eq.s32.totalorder %s23, 0
      %p71 = por %p69, %p70
      %s73 = sadd.s32 %s72, 1
      %p76 = scmp.eq.s32.totalorder %s17, 1
      %p77 = scmp.ne.s32.totalorder %s72, %s74
      %p78 = scmp.eq.s32.totalorder %s17, 0
      %p79 = por %p77, %p78
      %p80 = scmp.ne.s32.totalorder %s72, %s74
      %p81 = scmp.eq.s32.totalorder %s22, 1
      %p82 = por %p80, %p81
      %p83 = scmp.ne.s32.totalorder %s74, %s75
      %p84 = scmp.eq.s32.totalorder %s22, 0
      %p85 = por %p83, %p84
      %p86 = scmp.ne.s32.totalorder %s74, %s75
      %p87 = scmp.eq.s32.totalorder %s23, 1
      %p88 = por %p86, %p87
      %p90 = scmp.ne.s32.totalorder %s75, %s89
      %p91 = scmp.eq.s32.totalorder %s23, 0
      %p92 = por %p90, %p91
      %s94 = sadd.s32 %s93, 1
      %p97 = scmp.eq.s32.totalorder %s17, 1
      %p98 = scmp.ne.s32.totalorder %s93, %s95
      %p99 = scmp.eq.s32.totalorder %s17, 0
      %p100 = por %p98, %p99
      %p101 = scmp.ne.s32.totalorder %s93, %s95
      %p102 = scmp.eq.s32.totalorder %s22, 1
      %p103 = por %p101, %p102
      %p104 = scmp.ne.s32.totalorder %s95, %s96
      %p105 = scmp.eq.s32.totalorder %s22, 0
      %p106 = por %p104, %p105
      %p107 = scmp.ne.s32.totalorder %s95, %s96
      %p108 = scmp.eq.s32.totalorder %s23, 1
      %p109 = por %p107, %p108
      %p111 = scmp.ne.s32.totalorder %s96, %s110
      %p112 = scmp.eq.s32.totalorder %s23, 0
      %p113 = por %p111, %p112
      %s115 = sadd.s32 %s114, 1
      %p118 = scmp.eq.s32.totalorder %s17, 1
      %p119 = scmp.ne.s32.totalorder %s114, %s116
      %p120 = scmp.eq.s32.totalorder %s17, 0
      %p121 = por %p119, %p120
      %p122 = scmp.ne.s32.totalorder %s114, %s116
      %p123 = scmp.eq.s32.totalorder %s22, 1
      %p124 = por %p122, %p123
      %p125 = scmp.ne.s32.totalorder %s116, %s117
      %p126 = scmp.eq.s32.totalorder %s22, 0
      %p127 = por %p125, %p126
      %p128 = scmp.ne.s32.totalorder %s116, %s117
      %p129 = scmp.eq.s32.totalorder %s23, 1
      %p130 = por %p128, %p129
      %p132 = scmp.ne.s32.totalorder %s117, %s131
      %p133 = scmp.eq.s32.totalorder %s23, 0
      %p134 = por %p132, %p133
      %s136 = sadd.s32 %s135, 1
      %p139 = scmp.eq.s32.totalorder %s17, 1
      %p140 = scmp.ne.s32.totalorder %s135, %s137
      %p141 = scmp.eq.s32.totalorder %s17, 0
      %p142 = por %p140, %p141
      %p143 = scmp.ne.s32.totalorder %s135, %s137
      %p144 = scmp.eq.s32.totalorder %s22, 1
      %p145 = por %p143, %p144
      %p146 = scmp.ne.s32.totalorder %s137, %s138
      %p147 = scmp.eq.s32.totalorder %s22, 0
      %p148 = por %p146, %p147
      %p149 = scmp.ne.s32.totalorder %s137, %s138
      %p150 = scmp.eq.s32.totalorder %s23, 1
      %p151 = por %p149, %p150
      %p153 = scmp.ne.s32.totalorder %s138, %s152
      %p154 = scmp.eq.s32.totalorder %s23, 0
      %p155 = por %p153, %p154
      %s157 = sadd.s32 %s156, 1
      %p160 = scmp.eq.s32.totalorder %s17, 1
      %p161 = scmp.ne.s32.totalorder %s156, %s158
      %p162 = scmp.eq.s32.totalorder %s17, 0
      %p163 = por %p161, %p162
      %p164 = scmp.ne.s32.totalorder %s156, %s158
      %p165 = scmp.eq.s32.totalorder %s22, 1
      %p166 = por %p164, %p165
      %p167 = scmp.ne.s32.totalorder %s158, %s159
      %p168 = scmp.eq.s32.totalorder %s22, 0
      %p169 = por %p167, %p168
      %p170 = scmp.ne.s32.totalorder %s158, %s159
      %p171 = scmp.eq.s32.totalorder %s23, 1
      %p172 = por %p170, %p171
      %p174 = scmp.ne.s32.totalorder %s159, %s173
      %p175 = scmp.eq.s32.totalorder %s23, 0
      %p176 = por %p174, %p175
      %s177 = ssub.s32 %s17, %s24
      %p178 = scmp.eq.s32.totalorder %s177, 0
      %s180 = sadd.s32 %s179, 1
      %s181 = scalar_select %p178, %s179, %s180
      %p184 = pneg %p178
      %p185 = scmp.eq.s32.totalorder %s17, 1
      %p186 = por %p184, %p185
      %p187 = scmp.ne.s32.totalorder %s179, %s182
      %p188 = scmp.eq.s32.totalorder %s17, 0
      %p189 = por %p187, %p188
      %p190 = scmp.ne.s32.totalorder %s179, %s182
      %p191 = scmp.eq.s32.totalorder %s22, 1
      %p192 = por %p190, %p191
      %p193 = scmp.ne.s32.totalorder %s182, %s183
      %p194 = scmp.eq.s32.totalorder %s22, 0
      %p195 = por %p193, %p194
      %p196 = scmp.ne.s32.totalorder %s182, %s183
      %p197 = scmp.eq.s32.totalorder %s23, 1
      %p198 = por %p196, %p197
      %p200 = scmp.ne.s32.totalorder %s183, %s199
      %p201 = scmp.eq.s32.totalorder %s23, 0
      %p202 = por %p200, %p201
      %p203 = scmp.le.s32.totalorder 1, %s17
      %p204 = scmp.lt.s32.totalorder %s17, 3
      %p205 = pnand %p203, %p204
      %p206 = pneg %p205
      // Predicated region
      $region9: #{bottleneck_block.1} parent=5 // pred_check
        _
      $region10: #{bottleneck_block.1} parent=5 // pred_check_branch
        %208 = sbr.rel (%p205) target = $region12
      $region11: #{bottleneck_block.1} parent=5 // pred_region
        %s209 = ssub.s32 %s17, 1
        // Predicated region
        $region13: #{bottleneck_block.1} parent=11 // pred_check
          %p210 = pneg %p64
        $region14: #{bottleneck_block.1} parent=11 // pred_check_branch
          %212 = sbr.rel (%p210) target = $region16
        $region15: #{bottleneck_block.1} parent=11 // pred_region
          _
        $region16: #{bottleneck_block.1} parent=11 // pred_fallthru
          _
        // Predicated region
        $region17: #{bottleneck_block.1} parent=11 // pred_check
          %p213 = pneg %p85
        $region18: #{bottleneck_block.1} parent=11 // pred_check_branch
          %215 = sbr.rel (%p213) target = $region20
        $region19: #{bottleneck_block.1} parent=11 // pred_region
          _
        $region20: #{bottleneck_block.1} parent=11 // pred_fallthru
          _
        // Predicated region
        $region21: #{bottleneck_block.1} parent=11 // pred_check
          %p216 = pneg %p106
        $region22: #{bottleneck_block.1} parent=11 // pred_check_branch
          %218 = sbr.rel (%p216) target = $region24
        $region23: #{bottleneck_block.1} parent=11 // pred_region
          %s220 = ssub.s32 9216, 9216
          %221 = vsyncadd [#allocation4], %s220
          %s222 = sshll.u32 [#allocation3], 4
          %s223 = int_to_ptr.vmem [resolvable:$true] %s222
          %228 = dma.hbm_to_vmem [thread:$0]  %s3, 9216, %s223, [#allocation4], 64, 64, 4
        $region24: #{bottleneck_block.1} parent=11 // pred_fallthru
          _
        // Predicated region
        $region25: #{bottleneck_block.1} parent=11 // pred_check
          %p229 = pneg %p127
        $region26: #{bottleneck_block.1} parent=11 // pred_check_branch
          %231 = sbr.rel (%p229) target = $region28
        $region27: #{bottleneck_block.1} parent=11 // pred_region
          _
        $region28: #{bottleneck_block.1} parent=11 // pred_fallthru
          _
        // Predicated region
        $region29: #{bottleneck_block.1} parent=11 // pred_check
          %p232 = pneg %p148
        $region30: #{bottleneck_block.1} parent=11 // pred_check_branch
          %234 = sbr.rel (%p232) target = $region32
        $region31: #{bottleneck_block.1} parent=11 // pred_region
          _
        $region32: #{bottleneck_block.1} parent=11 // pred_fallthru
          _
        // Predicated region
        $region33: #{bottleneck_block.1} parent=11 // pred_check
          %p235 = pneg %p169
        $region34: #{bottleneck_block.1} parent=11 // pred_check_branch
          %237 = sbr.rel (%p235) target = $region36
        $region35: #{bottleneck_block.1} parent=11 // pred_region
          _
        $region36: #{bottleneck_block.1} parent=11 // pred_fallthru
          _
      $region12: #{bottleneck_block.1} parent=5 // pred_fallthru
        _
      %p238 = scmp.lt.s32.totalorder %s17, 2
      // Predicated region
      $region37: #{bottleneck_block.1} parent=5 // pred_check
        %p239 = pneg %p238
      $region38: #{bottleneck_block.1} parent=5 // pred_check_branch
        %241 = sbr.rel (%p239) target = $region40
      $region39: #{bottleneck_block.1} parent=5 // pred_region
        // Predicated region
        $region41: #{bottleneck_block.1} parent=39 // pred_check
          %p242 = pneg %p37
        $region42: #{bottleneck_block.1} parent=39 // pred_check_branch
          %244 = sbr.rel (%p242) target = $region44
        $region43: #{bottleneck_block.1} parent=39 // pred_region
          %p245 = scmp.lt.s32.totalorder %s17, 1
          %s246 = scalar_select %p245, %s17, 1
          %s247 = smul.addr %s246, 8
          %s248 = smul.addr %s247, 8
          %s249 = scalar_lea.vmem %s0, %s248
        $region44: #{bottleneck_block.1} parent=39 // pred_fallthru
          _
      $region40: #{bottleneck_block.1} parent=5 // pred_fallthru
        _
      %p250 = scmp.le.s32.totalorder 1, %s17
      %p251 = scmp.lt.s32.totalorder %s17, 3
      %p252 = pnand %p250, %p251
      %p253 = pneg %p252
      // Predicated region
      $region45: #{bottleneck_block.1} parent=5 // pred_check
        _
      $region46: #{bottleneck_block.1} parent=5 // pred_check_branch
        %255 = sbr.rel (%p252) target = $region48
      $region47: #{bottleneck_block.1} parent=5 // pred_region
        %s256 = ssub.s32 %s17, 1
        // Predicated region
        $region49: #{bottleneck_block.1} parent=47 // pred_check
          %p257 = pneg %p106
        $region50: #{bottleneck_block.1} parent=47 // pred_check_branch
          %259 = sbr.rel (%p257) target = $region52
        $region51: #{bottleneck_block.1} parent=47 // pred_region
          %260 = dma.done [#allocation4], 9216
        $region52: #{bottleneck_block.1} parent=47 // pred_fallthru
          _
        %p261 = scmp.lt.s32.totalorder %s22, 1
        %s262 = scalar_select %p261, %s22, 1
        %s263 = smul.addr %s262, 8
        %s264 = smul.addr %s263, 8
        %s265 = scalar_lea.vmem %s0, %s264
        %p266 = pneg %p43
        %p267 = pneg %p40
        %p268 = pneg %p64
        %p269 = pneg %p61
        %p270 = pneg %p85
        %p271 = pneg %p82
        %p272 = pneg %p106
        %p273 = pneg %p103
        %p274 = pneg %p127
        %p275 = pneg %p124
        %p276 = pneg %p148
        %p277 = pneg %p145
        %p278 = pneg %p169
        %p279 = pneg %p166
        %p280 = pneg %p195
        %p281 = pneg %p192
        %s282 = sand.u32 %s182, 1
        %s283 = scalar_lea.sflag [#allocation5], %s282
        %s284 = sand.u32 %s182, 1
        %s285 = smul.addr %s284, 64
        %s286 = scalar_lea.vmem [#allocation6], %s285
        %p287 = scmp.lt.s32.totalorder %s22, 1
        %s288 = scalar_select %p287, %s22, 1
        %s289 = smul.addr %s288, 8
        %s290 = smul.addr %s289, 8
        %s291 = scalar_lea.vmem %s0, %s290
        %v293 = vld [vmem:[%s291] sm:$0xff]
        %v294 = vld [vmem:[%s291 + $0x8] sm:$0xff]
        %v295 = vld [vmem:[%s291 + $0x10] sm:$0xff]
        %v296 = vld [vmem:[%s291 + $0x18] sm:$0xff]
        %v297 = vld [vmem:[%s291 + $0x20] sm:$0xff]
        %v298 = vld [vmem:[%s291 + $0x28] sm:$0xff]
        %v299 = vld [vmem:[%s291 + $0x30] sm:$0xff]
        %v300 = vld [vmem:[%s291 + $0x38] sm:$0xff]
        %v301 = vpack.c.bf16 %v294, %v293
        %v302 = vpack.c.bf16 %v296, %v295
        %v303 = vpack.c.bf16 %v298, %v297
        %v304 = vpack.c.bf16 %v300, %v299
        %v305 = vld [vmem:[%s1] sm:$0xf]
        %v306 = vld [vmem:[%s1 + $0x4] sm:$0xf]
        %v307 = vld [vmem:[%s1 + $0x8] sm:$0xf]
        %v308 = vld [vmem:[%s1 + $0xc] sm:$0xf]
        %v309 = vld [vmem:[%s1 + $0x10] sm:$0xf]
        %v310 = vld [vmem:[%s1 + $0x14] sm:$0xf]
        %v311 = vld [vmem:[%s1 + $0x18] sm:$0xf]
        %v312 = vld [vmem:[%s1 + $0x1c] sm:$0xf]
        %v313 = vld [vmem:[%s1 + $0x20] sm:$0xf]
        %v314 = vld [vmem:[%s1 + $0x24] sm:$0xf]
        %v315 = vld [vmem:[%s1 + $0x28] sm:$0xf]
        %v316 = vld [vmem:[%s1 + $0x2c] sm:$0xf]
        %v317 = vld [vmem:[%s1 + $0x30] sm:$0xf]
        %v318 = vld [vmem:[%s1 + $0x34] sm:$0xf]
        %v319 = vld [vmem:[%s1 + $0x38] sm:$0xf]
        %v320 = vld [vmem:[%s1 + $0x3c] sm:$0xf]
        %v321 = vld [vmem:[%s2] sm:$0x1]
        %v323 = vlaneseq
        %v324 = vshrl.u32 %v323, 7
        %v325 = vsub.s32 0, %v324
        %v326 = vrot.slane %v321, %v325
        %v344 = vunpack.c.l.b16 %v305
        %v345 = vunpack.c.l.b16 %v306
        %v346 = vunpack.c.l.b16 %v307
        %v347 = vunpack.c.l.b16 %v308
        %v348 = vunpack.c.l.b16 %v309
        %v349 = vunpack.c.l.b16 %v310
        %v350 = vunpack.c.l.b16 %v311
        %v351 = vunpack.c.l.b16 %v312
        %v352 = vunpack.c.l.b16 %v313
        %v353 = vunpack.c.l.b16 %v314
        %v354 = vunpack.c.l.b16 %v315
        %v355 = vunpack.c.l.b16 %v316
        %v356 = vunpack.c.l.b16 %v317
        %v357 = vunpack.c.l.b16 %v318
        %v358 = vunpack.c.l.b16 %v319
        %v359 = vunpack.c.l.b16 %v320
        %v360 = vpack.c.b16 %v345, %v344
        %v361 = vpack.c.b16 %v347, %v346
        %v362 = vpack.c.b16 %v349, %v348
        %v363 = vpack.c.b16 %v351, %v350
        %v364 = vpack.c.b16 %v353, %v352
        %v365 = vpack.c.b16 %v355, %v354
        %v366 = vpack.c.b16 %v357, %v356
        %v367 = vpack.c.b16 %v359, %v358
        %376 = vmatprep.subr.bf16.mxu0 0
        %377 = vmatpush1.bf16.msra.mxu0 %v360
        %378 = vmatprep.subr.bf16.mxu0 0
        %379 = vmatpush1.bf16.msra.mxu0 %v361
        %380 = vmatprep.subr.bf16.mxu0 0
        %381 = vmatpush1.bf16.msra.mxu0 %v362
        %382 = vmatprep.subr.bf16.mxu0 0
        %383 = vmatpush1.bf16.msra.mxu0 %v363
        %384 = vmatprep.subr.bf16.mxu0 0
        %385 = vmatpush1.bf16.msra.mxu0 %v364
        %386 = vmatprep.subr.bf16.mxu0 0
        %387 = vmatpush1.bf16.msra.mxu0 %v365
        %388 = vmatprep.subr.bf16.mxu0 0
        %389 = vmatpush1.bf16.msra.mxu0 %v366
        %390 = vmatprep.subr.bf16.mxu0 0
        %391 = vmatpush1.bf16.msra.mxu0 %v367
        %392 = vmatprep.subr.bf16.mxu0 0
        %393 = vmatpush1.bf16.msra.mxu0 0
        %394 = vmatprep.subr.bf16.mxu0 0
        %395 = vmatpush1.bf16.msra.mxu0 0
        %396 = vmatprep.subr.bf16.mxu0 0
        %397 = vmatpush1.bf16.msra.mxu0 0
        %398 = vmatprep.subr.bf16.mxu0 0
        %399 = vmatpush1.bf16.msra.mxu0 0
        %400 = vmatprep.subr.bf16.mxu0 0
        %401 = vmatpush1.bf16.msra.mxu0 0
        %402 = vmatprep.subr.bf16.mxu0 0
        %403 = vmatpush1.bf16.msra.mxu0 0
        %404 = vmatprep.subr.bf16.mxu0 0
        %405 = vmatpush1.bf16.msra.mxu0 0
        %406 = vmatprep.subr.bf16.mxu0 0
        %407 = vmatpush1.bf16.msra.mxu0 0
        %408 = vmatprep.mubr.bf16.mxu0 0
        %409 = vmatmul.mubr.bf16.gmra.mrb[0].mxu0 %v301
        %v410 = vpop.f32.mrb[0].mxu0
        %v411 = vadd.f32 %v326, %v410
        %v412 = vpop.f32.mrb[0].mxu0
        %v413 = vpop.f32.mrb[0].mxu0
        %v414 = vadd.f32 %v326, %v413
        %v415 = vpop.f32.mrb[0].mxu0
        %416 = vmatprep.mubr.bf16.mxu0 0
        %417 = vmatmul.mubr.bf16.gmra.mrb[0].mxu0 %v302
        %v418 = vpop.f32.mrb[0].mxu0
        %v419 = vadd.f32 %v326, %v418
        %v420 = vpop.f32.mrb[0].mxu0
        %v421 = vpop.f32.mrb[0].mxu0
        %v422 = vadd.f32 %v326, %v421
        %v423 = vpop.f32.mrb[0].mxu0
        %424 = vmatprep.mubr.bf16.mxu0 0
        %425 = vmatmul.mubr.bf16.gmra.mrb[0].mxu0 %v303
        %v426 = vpop.f32.mrb[0].mxu0
        %v427 = vadd.f32 %v326, %v426
        %v428 = vpop.f32.mrb[0].mxu0
        %v429 = vpop.f32.mrb[0].mxu0
        %v430 = vadd.f32 %v326, %v429
        %v431 = vpop.f32.mrb[0].mxu0
        %432 = vmatprep.mubr.bf16.mxu0 0
        %433 = vmatmul.mubr.bf16.gmra.mrb[0].mxu0 %v304
        %v434 = vpop.f32.mrb[0].mxu0
        %v435 = vadd.f32 %v326, %v434
        %v436 = vpop.f32.mrb[0].mxu0
        %v437 = vpop.f32.mrb[0].mxu0
        %v438 = vadd.f32 %v326, %v437
        %v439 = vpop.f32.mrb[0].mxu0
        %440 = vdwg.mxu0
        %v441 = vmax.f32 %v411, 0.0
        %v442 = vmax.f32 %v414, 0.0
        %v443 = vmax.f32 %v419, 0.0
        %v444 = vmax.f32 %v422, 0.0
        %v445 = vmax.f32 %v427, 0.0
        %v446 = vmax.f32 %v430, 0.0
        %v447 = vmax.f32 %v435, 0.0
        %v448 = vmax.f32 %v438, 0.0
        %v449 = vpack.c.bf16 %v442, %v441
        %v450 = vpack.c.bf16 %v444, %v443
        %v451 = vpack.c.bf16 %v446, %v445
        %v452 = vpack.c.bf16 %v448, %v447
        %453 = vst [vmem:[#allocation2] sm:$0xf] 0
        %454 = vst [vmem:[#allocation2 + $0x4] sm:$0x1] 0
        %s455 = scalar_lea.vmem [#allocation2], 72
        %456 = vst [vmem:[%s455] sm:$0xf] 0
        %457 = vst [vmem:[%s455 + $0x4] sm:$0x1] 0
        %s458 = scalar_lea.vmem [#allocation2], 8
        %vm459 = vcmask 1040384
        %vm460 = vsmask.f32 256
        %vm461 = vmand %vm459, %vm460
        %v462 = vld [vmem:[%s458] sm:$0x1]
        %v463 = vsel %vm461, 0, %v462
        %464 = vst [vmem:[%s458] sm:$0x1] %v463
        %v465 = vld [vmem:[%s458 + $0x8] sm:$0x1]
        %v466 = vsel %vm461, 0, %v465
        %467 = vst [vmem:[%s458 + $0x8] sm:$0x1] %v466
        %v468 = vld [vmem:[%s458 + $0x10] sm:$0x1]
        %v469 = vsel %vm461, 0, %v468
        %470 = vst [vmem:[%s458 + $0x10] sm:$0x1] %v469
        %v471 = vld [vmem:[%s458 + $0x18] sm:$0x1]
        %v472 = vsel %vm461, 0, %v471
        %473 = vst [vmem:[%s458 + $0x18] sm:$0x1] %v472
        %v474 = vld [vmem:[%s458 + $0x20] sm:$0x1]
        %v475 = vsel %vm461, 0, %v474
        %476 = vst [vmem:[%s458 + $0x20] sm:$0x1] %v475
        %v477 = vld [vmem:[%s458 + $0x28] sm:$0x1]
        %v478 = vsel %vm461, 0, %v477
        %479 = vst [vmem:[%s458 + $0x28] sm:$0x1] %v478
        %v480 = vld [vmem:[%s458 + $0x30] sm:$0x1]
        %v481 = vsel %vm461, 0, %v480
        %482 = vst [vmem:[%s458 + $0x30] sm:$0x1] %v481
        %v483 = vld [vmem:[%s458 + $0x38] sm:$0x1]
        %v484 = vsel %vm461, 0, %v483
        %485 = vst [vmem:[%s458 + $0x38] sm:$0x1] %v484
        %vm486 = vsmask.f32 7938
        %vm487 = vmand %vm459, %vm486
        %v488 = vld [vmem:[%s458 + $0x4] sm:$0x1]
        %v489 = vsel %vm487, 0, %v488
        %490 = vst [vmem:[%s458 + $0x4] sm:$0x1] %v489
        %v491 = vld [vmem:[%s458 + $0xc] sm:$0x1]
        %v492 = vsel %vm487, 0, %v491
        %493 = vst [vmem:[%s458 + $0xc] sm:$0x1] %v492
        %v494 = vld [vmem:[%s458 + $0x14] sm:$0x1]
        %v495 = vsel %vm487, 0, %v494
        %496 = vst [vmem:[%s458 + $0x14] sm:$0x1] %v495
        %v497 = vld [vmem:[%s458 + $0x1c] sm:$0x1]
        %v498 = vsel %vm487, 0, %v497
        %499 = vst [vmem:[%s458 + $0x1c] sm:$0x1] %v498
        %v500 = vld [vmem:[%s458 + $0x24] sm:$0x1]
        %v501 = vsel %vm487, 0, %v500
        %502 = vst [vmem:[%s458 + $0x24] sm:$0x1] %v501
        %v503 = vld [vmem:[%s458 + $0x2c] sm:$0x1]
        %v504 = vsel %vm487, 0, %v503
        %505 = vst [vmem:[%s458 + $0x2c] sm:$0x1] %v504
        %v506 = vld [vmem:[%s458 + $0x34] sm:$0x1]
        %v507 = vsel %vm487, 0, %v506
        %508 = vst [vmem:[%s458 + $0x34] sm:$0x1] %v507
        %v509 = vld [vmem:[%s458 + $0x3c] sm:$0x1]
        %v510 = vsel %vm487, 0, %v509
        %511 = vst [vmem:[%s458 + $0x3c] sm:$0x1] %v510
        %v516 = vunpack.c.l.b16 %v449
        %v517 = vunpack.c.h.b16 %v449
        %v518 = vunpack.c.l.b16 %v450
        %v519 = vunpack.c.h.b16 %v450
        %v520 = vunpack.c.l.b16 %v451
        %v521 = vunpack.c.h.b16 %v451
        %v522 = vunpack.c.l.b16 %v452
        %v523 = vunpack.c.h.b16 %v452
        %v524 = vpack.c.b16 %v516, %v516
        %v525 = vpack.c.b16 %v517, %v517
        %v526 = vpack.c.b16 %v518, %v518
        %v527 = vpack.c.b16 %v519, %v519
        %v528 = vpack.c.b16 %v520, %v520
        %v529 = vpack.c.b16 %v521, %v521
        %v530 = vpack.c.b16 %v522, %v522
        %v531 = vpack.c.b16 %v523, %v523
        %v533 = vshrl.u32 %v524, 16
        %v535 = vrot.slane %v533, 7
        %v536 = vshll.u32 %v524, 16
        %v538 = vor.u32 %v535, %v536
        %v539 = vrot.slane %v535, 4
        %v541 = vshrl.u32 %v525, 16
        %v543 = vrot.slane %v541, 7
        %v544 = vshll.u32 %v525, 16
        %v546 = vor.u32 %v543, %v544
        %v547 = vrot.slane %v543, 4
        %v549 = vshrl.u32 %v526, 16
        %v551 = vrot.slane %v549, 7
        %v552 = vshll.u32 %v526, 16
        %v554 = vor.u32 %v551, %v552
        %v555 = vrot.slane %v551, 4
        %v557 = vshrl.u32 %v527, 16
        %v559 = vrot.slane %v557, 7
        %v560 = vshll.u32 %v527, 16
        %v562 = vor.u32 %v559, %v560
        %v563 = vrot.slane %v559, 4
        %v565 = vshrl.u32 %v528, 16
        %v567 = vrot.slane %v565, 7
        %v568 = vshll.u32 %v528, 16
        %v570 = vor.u32 %v567, %v568
        %v571 = vrot.slane %v567, 4
        %v573 = vshrl.u32 %v529, 16
        %v575 = vrot.slane %v573, 7
        %v576 = vshll.u32 %v529, 16
        %v578 = vor.u32 %v575, %v576
        %v579 = vrot.slane %v575, 4
        %v581 = vshrl.u32 %v530, 16
        %v583 = vrot.slane %v581, 7
        %v584 = vshll.u32 %v530, 16
        %v586 = vor.u32 %v583, %v584
        %v587 = vrot.slane %v583, 4
        %v589 = vshrl.u32 %v531, 16
        %v591 = vrot.slane %v589, 7
        %v592 = vshll.u32 %v531, 16
        %v594 = vor.u32 %v591, %v592
        %v595 = vrot.slane %v591, 4
        %vm612 = vcmask 1043456
        %vm613 = vmand %vm612, %vm486
        %v614 = vld [vmem:[%s458] sm:$0xf]
        %v615 = vsel %vm613, %v538, %v614
        %616 = vst [vmem:[%s458] sm:$0xf] %v615
        %v617 = vld [vmem:[%s458 + $0x4] sm:$0x1]
        %v618 = vsel %vm461, %v539, %v617
        %619 = vst [vmem:[%s458 + $0x4] sm:$0x1] %v618
        %v620 = vld [vmem:[%s458 + $0x8] sm:$0xf]
        %v621 = vsel %vm613, %v546, %v620
        %622 = vst [vmem:[%s458 + $0x8] sm:$0xf] %v621
        %v623 = vld [vmem:[%s458 + $0xc] sm:$0x1]
        %v624 = vsel %vm461, %v547, %v623
        %625 = vst [vmem:[%s458 + $0xc] sm:$0x1] %v624
        %v626 = vld [vmem:[%s458 + $0x10] sm:$0xf]
        %v627 = vsel %vm613, %v554, %v626
        %628 = vst [vmem:[%s458 + $0x10] sm:$0xf] %v627
        %v629 = vld [vmem:[%s458 + $0x14] sm:$0x1]
        %v630 = vsel %vm461, %v555, %v629
        %631 = vst [vmem:[%s458 + $0x14] sm:$0x1] %v630
        %v632 = vld [vmem:[%s458 + $0x18] sm:$0xf]
        %v633 = vsel %vm613, %v562, %v632
        %634 = vst [vmem:[%s458 + $0x18] sm:$0xf] %v633
        %v635 = vld [vmem:[%s458 + $0x1c] sm:$0x1]
        %v636 = vsel %vm461, %v563, %v635
        %637 = vst [vmem:[%s458 + $0x1c] sm:$0x1] %v636
        %v638 = vld [vmem:[%s458 + $0x20] sm:$0xf]
        %v639 = vsel %vm613, %v570, %v638
        %640 = vst [vmem:[%s458 + $0x20] sm:$0xf] %v639
        %v641 = vld [vmem:[%s458 + $0x24] sm:$0x1]
        %v642 = vsel %vm461, %v571, %v641
        %643 = vst [vmem:[%s458 + $0x24] sm:$0x1] %v642
        %v644 = vld [vmem:[%s458 + $0x28] sm:$0xf]
        %v645 = vsel %vm613, %v578, %v644
        %646 = vst [vmem:[%s458 + $0x28] sm:$0xf] %v645
        %v647 = vld [vmem:[%s458 + $0x2c] sm:$0x1]
        %v648 = vsel %vm461, %v579, %v647
        %649 = vst [vmem:[%s458 + $0x2c] sm:$0x1] %v648
        %v650 = vld [vmem:[%s458 + $0x30] sm:$0xf]
        %v651 = vsel %vm613, %v586, %v650
        %652 = vst [vmem:[%s458 + $0x30] sm:$0xf] %v651
        %v653 = vld [vmem:[%s458 + $0x34] sm:$0x1]
        %v654 = vsel %vm461, %v587, %v653
        %655 = vst [vmem:[%s458 + $0x34] sm:$0x1] %v654
        %v656 = vld [vmem:[%s458 + $0x38] sm:$0xf]
        %v657 = vsel %vm613, %v594, %v656
        %658 = vst [vmem:[%s458 + $0x38] sm:$0xf] %v657
        %v659 = vld [vmem:[%s458 + $0x3c] sm:$0x1]
        %v660 = vsel %vm461, %v595, %v659
        %661 = vst [vmem:[%s458 + $0x3c] sm:$0x1] %v660
        %v662 = vld [vmem:[#allocation2] sm:$0xf]
        %v663 = vld [vmem:[#allocation2 + $0x8] sm:$0xf]
        %v664 = vld [vmem:[#allocation2 + $0x10] sm:$0xf]
        %v665 = vld [vmem:[#allocation2 + $0x18] sm:$0xf]
        %v666 = vld [vmem:[#allocation2 + $0x20] sm:$0xf]
        %v667 = vld [vmem:[#allocation2 + $0x28] sm:$0xf]
        %v668 = vld [vmem:[#allocation2 + $0x30] sm:$0xf]
        %v669 = vld [vmem:[#allocation2 + $0x38] sm:$0xf]
        %v670 = vld [vmem:[#allocation3] sm:$0xf]
        %v671 = vld [vmem:[#allocation3 + $0x4] sm:$0xf]
        %v672 = vld [vmem:[#allocation3 + $0x8] sm:$0xf]
        %v673 = vld [vmem:[#allocation3 + $0xc] sm:$0xf]
        %v674 = vld [vmem:[#allocation3 + $0x10] sm:$0xf]
        %v675 = vld [vmem:[#allocation3 + $0x14] sm:$0xf]
        %v676 = vld [vmem:[#allocation3 + $0x18] sm:$0xf]
        %v677 = vld [vmem:[#allocation3 + $0x1c] sm:$0xf]
        %v678 = vld [vmem:[#allocation3 + $0x20] sm:$0xf]
        %v679 = vld [vmem:[#allocation3 + $0x24] sm:$0xf]
        %v680 = vld [vmem:[#allocation3 + $0x28] sm:$0xf]
        %v681 = vld [vmem:[#allocation3 + $0x2c] sm:$0xf]
        %v682 = vld [vmem:[#allocation3 + $0x30] sm:$0xf]
        %v683 = vld [vmem:[#allocation3 + $0x34] sm:$0xf]
        %v684 = vld [vmem:[#allocation3 + $0x38] sm:$0xf]
        %v685 = vld [vmem:[#allocation3 + $0x3c] sm:$0xf]
        %v686 = vld [vmem:[#allocation2 + $0x4] sm:$0x1]
        %v687 = vld [vmem:[#allocation2 + $0xc] sm:$0x1]
        %v688 = vld [vmem:[#allocation2 + $0x14] sm:$0x1]
        %v689 = vld [vmem:[#allocation2 + $0x1c] sm:$0x1]
        %v690 = vld [vmem:[#allocation2 + $0x24] sm:$0x1]
        %v691 = vld [vmem:[#allocation2 + $0x2c] sm:$0x1]
        %v692 = vld [vmem:[#allocation2 + $0x34] sm:$0x1]
        %v693 = vld [vmem:[#allocation2 + $0x3c] sm:$0x1]
        %vm694 = vsmask.f32 3328
        %vm695 = vsmask.f32 7440
        %vm696 = vmor %vm694, %vm695
        %v698 = vshrl.u32 %v662, 16
        %v700 = vrot.slane %v698, 4
        %v701 = vshll.u32 %v662, 16
        %v703 = vrot.slane %v701, 5
        %v704 = vor.u32 %v700, %v703
        %v705 = vrot.slane %v704, 4
        %v707 = vshll.u32 %v686, 16
        %v709 = vrot.slane %v707, 5
        %v710 = vsel %vm696, %v705, %v709
        %v712 = vshrl.u32 %v663, 16
        %v714 = vrot.slane %v712, 4
        %v715 = vshll.u32 %v663, 16
        %v717 = vrot.slane %v715, 5
        %v718 = vor.u32 %v714, %v717
        %v719 = vrot.slane %v718, 4
        %v721 = vshll.u32 %v687, 16
        %v723 = vrot.slane %v721, 5
        %v724 = vsel %vm696, %v719, %v723
        %v726 = vshrl.u32 %v664, 16
        %v728 = vrot.slane %v726, 4
        %v729 = vshll.u32 %v664, 16
        %v731 = vrot.slane %v729, 5
        %v732 = vor.u32 %v728, %v731
        %v733 = vrot.slane %v732, 4
        %v735 = vshll.u32 %v688, 16
        %v737 = vrot.slane %v735, 5
        %v738 = vsel %vm696, %v733, %v737
        %v740 = vshrl.u32 %v665, 16
        %v742 = vrot.slane %v740, 4
        %v743 = vshll.u32 %v665, 16
        %v745 = vrot.slane %v743, 5
        %v746 = vor.u32 %v742, %v745
        %v747 = vrot.slane %v746, 4
        %v749 = vshll.u32 %v689, 16
        %v751 = vrot.slane %v749, 5
        %v752 = vsel %vm696, %v747, %v751
        %v754 = vshrl.u32 %v666, 16
        %v756 = vrot.slane %v754, 4
        %v757 = vshll.u32 %v666, 16
        %v759 = vrot.slane %v757, 5
        %v760 = vor.u32 %v756, %v759
        %v761 = vrot.slane %v760, 4
        %v763 = vshll.u32 %v690, 16
        %v765 = vrot.slane %v763, 5
        %v766 = vsel %vm696, %v761, %v765
        %v768 = vshrl.u32 %v667, 16
        %v770 = vrot.slane %v768, 4
        %v771 = vshll.u32 %v667, 16
        %v773 = vrot.slane %v771, 5
        %v774 = vor.u32 %v770, %v773
        %v775 = vrot.slane %v774, 4
        %v777 = vshll.u32 %v691, 16
        %v779 = vrot.slane %v777, 5
        %v780 = vsel %vm696, %v775, %v779
        %v782 = vshrl.u32 %v668, 16
        %v784 = vrot.slane %v782, 4
        %v785 = vshll.u32 %v668, 16
        %v787 = vrot.slane %v785, 5
        %v788 = vor.u32 %v784, %v787
        %v789 = vrot.slane %v788, 4
        %v791 = vshll.u32 %v692, 16
        %v793 = vrot.slane %v791, 5
        %v794 = vsel %vm696, %v789, %v793
        %v796 = vshrl.u32 %v669, 16
        %v798 = vrot.slane %v796, 4
        %v799 = vshll.u32 %v669, 16
        %v801 = vrot.slane %v799, 5
        %v802 = vor.u32 %v798, %v801
        %v803 = vrot.slane %v802, 4
        %v805 = vshll.u32 %v693, 16
        %v807 = vrot.slane %v805, 5
        %v808 = vsel %vm696, %v803, %v807
        %v809 = vld [vmem:[#allocation3 + $0x40] sm:$0xf]
        %v810 = vld [vmem:[#allocation3 + $0x44] sm:$0xf]
        %v811 = vld [vmem:[#allocation3 + $0x48] sm:$0xf]
        %v812 = vld [vmem:[#allocation3 + $0x4c] sm:$0xf]
        %v813 = vld [vmem:[#allocation3 + $0x50] sm:$0xf]
        %v814 = vld [vmem:[#allocation3 + $0x54] sm:$0xf]
        %v815 = vld [vmem:[#allocation3 + $0x58] sm:$0xf]
        %v816 = vld [vmem:[#allocation3 + $0x5c] sm:$0xf]
        %v817 = vld [vmem:[#allocation3 + $0x60] sm:$0xf]
        %v818 = vld [vmem:[#allocation3 + $0x64] sm:$0xf]
        %v819 = vld [vmem:[#allocation3 + $0x68] sm:$0xf]
        %v820 = vld [vmem:[#allocation3 + $0x6c] sm:$0xf]
        %v821 = vld [vmem:[#allocation3 + $0x70] sm:$0xf]
        %v822 = vld [vmem:[#allocation3 + $0x74] sm:$0xf]
        %v823 = vld [vmem:[#allocation3 + $0x78] sm:$0xf]
        %v824 = vld [vmem:[#allocation3 + $0x7c] sm:$0xf]
        %v825 = vunpack.c.l.b16 %v710
        %v826 = vunpack.c.l.b16 %v724
        %v827 = vunpack.c.l.b16 %v738
        %v828 = vunpack.c.l.b16 %v752
        %v829 = vunpack.c.l.b16 %v766
        %v830 = vunpack.c.l.b16 %v780
        %v831 = vunpack.c.l.b16 %v794
        %v832 = vunpack.c.l.b16 %v808
        %v833 = vpack.c.b16 %v826, %v825
        %v834 = vpack.c.b16 %v828, %v827
        %v835 = vpack.c.b16 %v830, %v829
        %v836 = vpack.c.b16 %v832, %v831
        %v857 = vunpack.c.l.b16 %v809
        %v858 = vunpack.c.l.b16 %v810
        %v859 = vunpack.c.l.b16 %v811
        %v860 = vunpack.c.l.b16 %v812
        %v861 = vunpack.c.l.b16 %v813
        %v862 = vunpack.c.l.b16 %v814
        %v863 = vunpack.c.l.b16 %v815
        %v864 = vunpack.c.l.b16 %v816
        %v865 = vunpack.c.l.b16 %v817
        %v866 = vunpack.c.l.b16 %v818
        %v867 = vunpack.c.l.b16 %v819
        %v868 = vunpack.c.l.b16 %v820
        %v869 = vunpack.c.l.b16 %v821
        %v870 = vunpack.c.l.b16 %v822
        %v871 = vunpack.c.l.b16 %v823
        %v872 = vunpack.c.l.b16 %v824
        %v873 = vpack.c.b16 %v858, %v857
        %v874 = vpack.c.b16 %v860, %v859
        %v875 = vpack.c.b16 %v862, %v861
        %v876 = vpack.c.b16 %v864, %v863
        %v877 = vpack.c.b16 %v866, %v865
        %v878 = vpack.c.b16 %v868, %v867
        %v879 = vpack.c.b16 %v870, %v869
        %v880 = vpack.c.b16 %v872, %v871
        %889 = vmatprep.subr.bf16.mxu0 0
        %890 = vmatpush1.bf16.msra.mxu0 %v873
        %891 = vmatprep.subr.bf16.mxu0 0
        %892 = vmatpush1.bf16.msra.mxu0 %v874
        %893 = vmatprep.subr.bf16.mxu0 0
        %894 = vmatpush1.bf16.msra.mxu0 %v875
        %895 = vmatprep.subr.bf16.mxu0 0
        %896 = vmatpush1.bf16.msra.mxu0 %v876
        %897 = vmatprep.subr.bf16.mxu0 0
        %898 = vmatpush1.bf16.msra.mxu0 %v877
        %899 = vmatprep.subr.bf16.mxu0 0
        %900 = vmatpush1.bf16.msra.mxu0 %v878
        %901 = vmatprep.subr.bf16.mxu0 0
        %902 = vmatpush1.bf16.msra.mxu0 %v879
        %903 = vmatprep.subr.bf16.mxu0 0
        %904 = vmatpush1.bf16.msra.mxu0 %v880
        %905 = vmatprep.subr.bf16.mxu0 0
        %906 = vmatpush1.bf16.msra.mxu0 0
        %907 = vmatprep.subr.bf16.mxu0 0
        %908 = vmatpush1.bf16.msra.mxu0 0
        %909 = vmatprep.subr.bf16.mxu0 0
        %910 = vmatpush1.bf16.msra.mxu0 0
        %911 = vmatprep.subr.bf16.mxu0 0
        %912 = vmatpush1.bf16.msra.mxu0 0
        %913 = vmatprep.subr.bf16.mxu0 0
        %914 = vmatpush1.bf16.msra.mxu0 0
        %915 = vmatprep.subr.bf16.mxu0 0
        %916 = vmatpush1.bf16.msra.mxu0 0
        %917 = vmatprep.subr.bf16.mxu0 0
        %918 = vmatpush1.bf16.msra.mxu0 0
        %919 = vmatprep.subr.bf16.mxu0 0
        %920 = vmatpush1.bf16.msra.mxu0 0
        %921 = vmatprep.mubr.bf16.mxu0 0
        %922 = vmatmul.mubr.bf16.gmra.mrb[0].mxu0 %v833
        %v923 = vpop.f32.mrb[0].mxu0
        %v924 = vadd.f32 0.0, %v923
        %v925 = vpop.f32.mrb[0].mxu0
        %v926 = vpop.f32.mrb[0].mxu0
        %v927 = vadd.f32 0.0, %v926
        %v928 = vpop.f32.mrb[0].mxu0
        %929 = vmatprep.mubr.bf16.mxu0 0
        %930 = vmatmul.mubr.bf16.gmra.mrb[0].mxu0 %v834
        %v931 = vpop.f32.mrb[0].mxu0
        %v932 = vadd.f32 0.0, %v931
        %v933 = vpop.f32.mrb[0].mxu0
        %v934 = vpop.f32.mrb[0].mxu0
        %v935 = vadd.f32 0.0, %v934
        %v936 = vpop.f32.mrb[0].mxu0
        %937 = vmatprep.mubr.bf16.mxu0 0
        %938 = vmatmul.mubr.bf16.gmra.mrb[0].mxu0 %v835
        %v939 = vpop.f32.mrb[0].mxu0
        %v940 = vadd.f32 0.0, %v939
        %v941 = vpop.f32.mrb[0].mxu0
        %v942 = vpop.f32.mrb[0].mxu0
        %v943 = vadd.f32 0.0, %v942
        %v944 = vpop.f32.mrb[0].mxu0
        %945 = vmatprep.mubr.bf16.mxu0 0
        %946 = vmatmul.mubr.bf16.gmra.mrb[0].mxu0 %v836
        %v947 = vpop.f32.mrb[0].mxu0
        %v948 = vadd.f32 0.0, %v947
        %v949 = vpop.f32.mrb[0].mxu0
        %v950 = vpop.f32.mrb[0].mxu0
        %v951 = vadd.f32 0.0, %v950
        %v952 = vpop.f32.mrb[0].mxu0
        %953 = vdwg.mxu0
        %v962 = vunpack.c.l.b16 %v662
        %v963 = vunpack.c.l.b16 %v663
        %v964 = vunpack.c.l.b16 %v664
        %v965 = vunpack.c.l.b16 %v665
        %v966 = vunpack.c.l.b16 %v666
        %v967 = vunpack.c.l.b16 %v667
        %v968 = vunpack.c.l.b16 %v668
        %v969 = vunpack.c.l.b16 %v669
        %v970 = vpack.c.b16 %v963, %v962
        %v971 = vpack.c.b16 %v965, %v964
        %v972 = vpack.c.b16 %v967, %v966
        %v973 = vpack.c.b16 %v969, %v968
        %v994 = vunpack.c.l.b16 %v670
        %v995 = vunpack.c.l.b16 %v671
        %v996 = vunpack.c.l.b16 %v672
        %v997 = vunpack.c.l.b16 %v673
        %v998 = vunpack.c.l.b16 %v674
        %v999 = vunpack.c.l.b16 %v675
        %v1000 = vunpack.c.l.b16 %v676
        %v1001 = vunpack.c.l.b16 %v677
        %v1002 = vunpack.c.l.b16 %v678
        %v1003 = vunpack.c.l.b16 %v679
        %v1004 = vunpack.c.l.b16 %v680
        %v1005 = vunpack.c.l.b16 %v681
        %v1006 = vunpack.c.l.b16 %v682
        %v1007 = vunpack.c.l.b16 %v683
        %v1008 = vunpack.c.l.b16 %v684
        %v1009 = vunpack.c.l.b16 %v685
        %v1010 = vpack.c.b16 %v995, %v994
        %v1011 = vpack.c.b16 %v997, %v996
        %v1012 = vpack.c.b16 %v999, %v998
        %v1013 = vpack.c.b16 %v1001, %v1000
        %v1014 = vpack.c.b16 %v1003, %v1002
        %v1015 = vpack.c.b16 %v1005, %v1004
        %v1016 = vpack.c.b16 %v1007, %v1006
        %v1017 = vpack.c.b16 %v1009, %v1008
        %1026 = vmatprep.subr.bf16.mxu0 0
        %1027 = vmatpush1.bf16.msra.mxu0 %v1010
        %1028 = vmatprep.subr.bf16.mxu0 0
        %1029 = vmatpush1.bf16.msra.mxu0 %v1011
        %1030 = vmatprep.subr.bf16.mxu0 0
        %1031 = vmatpush1.bf16.msra.mxu0 %v1012
        %1032 = vmatprep.subr.bf16.mxu0 0
        %1033 = vmatpush1.bf16.msra.mxu0 %v1013
        %1034 = vmatprep.subr.bf16.mxu0 0
        %1035 = vmatpush1.bf16.msra.mxu0 %v1014
        %1036 = vmatprep.subr.bf16.mxu0 0
        %1037 = vmatpush1.bf16.msra.mxu0 %v1015
        %1038 = vmatprep.subr.bf16.mxu0 0
        %1039 = vmatpush1.bf16.msra.mxu0 %v1016
        %1040 = vmatprep.subr.bf16.mxu0 0
        %1041 = vmatpush1.bf16.msra.mxu0 %v1017
        %1042 = vmatprep.subr.bf16.mxu0 0
        %1043 = vmatpush1.bf16.msra.mxu0 0
        %1044 = vmatprep.subr.bf16.mxu0 0
        %1045 = vmatpush1.bf16.msra.mxu0 0
        %1046 = vmatprep.subr.bf16.mxu0 0
        %1047 = vmatpush1.bf16.msra.mxu0 0
        %1048 = vmatprep.subr.bf16.mxu0 0
        %1049 = vmatpush1.bf16.msra.mxu0 0
        %1050 = vmatprep.subr.bf16.mxu0 0
        %1051 = vmatpush1.bf16.msra.mxu0 0
        %1052 = vmatprep.subr.bf16.mxu0 0
        %1053 = vmatpush1.bf16.msra.mxu0 0
        %1054 = vmatprep.subr.bf16.mxu0 0
        %1055 = vmatpush1.bf16.msra.mxu0 0
        %1056 = vmatprep.subr.bf16.mxu0 0
        %1057 = vmatpush1.bf16.msra.mxu0 0
        %1058 = vmatprep.mubr.bf16.mxu0 0
        %1059 = vmatmul.mubr.bf16.gmra.mrb[0].mxu0 %v970
        %v1060 = vpop.f32.mrb[0].mxu0
        %v1061 = vadd.f32 %v924, %v1060
        %v1062 = vpop.f32.mrb[0].mxu0
        %v1063 = vpop.f32.mrb[0].mxu0
        %v1064 = vadd.f32 %v927, %v1063
        %v1065 = vpop.f32.mrb[0].mxu0
        %1066 = vmatprep.mubr.bf16.mxu0 0
        %1067 = vmatmul.mubr.bf16.gmra.mrb[0].mxu0 %v971
        %v1068 = vpop.f32.mrb[0].mxu0
        %v1069 = vadd.f32 %v932, %v1068
        %v1070 = vpop.f32.mrb[0].mxu0
        %v1071 = vpop.f32.mrb[0].mxu0
        %v1072 = vadd.f32 %v935, %v1071
        %v1073 = vpop.f32.mrb[0].mxu0
        %1074 = vmatprep.mubr.bf16.mxu0 0
        %1075 = vmatmul.mubr.bf16.gmra.mrb[0].mxu0 %v972
        %v1076 = vpop.f32.mrb[0].mxu0
        %v1077 = vadd.f32 %v940, %v1076
        %v1078 = vpop.f32.mrb[0].mxu0
        %v1079 = vpop.f32.mrb[0].mxu0
        %v1080 = vadd.f32 %v943, %v1079
        %v1081 = vpop.f32.mrb[0].mxu0
        %1082 = vmatprep.mubr.bf16.mxu0 0
        %1083 = vmatmul.mubr.bf16.gmra.mrb[0].mxu0 %v973
        %v1084 = vpop.f32.mrb[0].mxu0
        %v1085 = vadd.f32 %v948, %v1084
        %v1086 = vpop.f32.mrb[0].mxu0
        %v1087 = vpop.f32.mrb[0].mxu0
        %v1088 = vadd.f32 %v951, %v1087
        %v1089 = vpop.f32.mrb[0].mxu0
        %1090 = vdwg.mxu0
        %v1091 = vld [vmem:[#allocation2] sm:$0xe]
        %v1092 = vld [vmem:[#allocation2 + $0x8] sm:$0xe]
        %v1093 = vld [vmem:[#allocation2 + $0x10] sm:$0xe]
        %v1094 = vld [vmem:[#allocation2 + $0x18] sm:$0xe]
        %v1095 = vld [vmem:[#allocation2 + $0x20] sm:$0xe]
        %v1096 = vld [vmem:[#allocation2 + $0x28] sm:$0xe]
        %v1097 = vld [vmem:[#allocation2 + $0x30] sm:$0xe]
        %v1098 = vld [vmem:[#allocation2 + $0x38] sm:$0xe]
        %vm1115 = vcmask 1042432
        %vm1116 = vcmask 1046532
        %vm1117 = vmor %vm1115, %vm1116
        %v1118 = vrot.slane %v1091, 5
        %v1119 = vrot.slane %v1118, 4
        %v1120 = vrot.slane %v686, 5
        %v1121 = vsel %vm1117, %v1119, %v1120
        %v1122 = vrot.slane %v1092, 5
        %v1123 = vrot.slane %v1122, 4
        %v1124 = vrot.slane %v687, 5
        %v1125 = vsel %vm1117, %v1123, %v1124
        %v1126 = vrot.slane %v1093, 5
        %v1127 = vrot.slane %v1126, 4
        %v1128 = vrot.slane %v688, 5
        %v1129 = vsel %vm1117, %v1127, %v1128
        %v1130 = vrot.slane %v1094, 5
        %v1131 = vrot.slane %v1130, 4
        %v1132 = vrot.slane %v689, 5
        %v1133 = vsel %vm1117, %v1131, %v1132
        %v1134 = vrot.slane %v1095, 5
        %v1135 = vrot.slane %v1134, 4
        %v1136 = vrot.slane %v690, 5
        %v1137 = vsel %vm1117, %v1135, %v1136
        %v1138 = vrot.slane %v1096, 5
        %v1139 = vrot.slane %v1138, 4
        %v1140 = vrot.slane %v691, 5
        %v1141 = vsel %vm1117, %v1139, %v1140
        %v1142 = vrot.slane %v1097, 5
        %v1143 = vrot.slane %v1142, 4
        %v1144 = vrot.slane %v692, 5
        %v1145 = vsel %vm1117, %v1143, %v1144
        %v1146 = vrot.slane %v1098, 5
        %v1147 = vrot.slane %v1146, 4
        %v1148 = vrot.slane %v693, 5
        %v1149 = vsel %vm1117, %v1147, %v1148
        %v1150 = vld [vmem:[#allocation3 + $0x80] sm:$0xf]
        %v1151 = vld [vmem:[#allocation3 + $0x84] sm:$0xf]
        %v1152 = vld [vmem:[#allocation3 + $0x88] sm:$0xf]
        %v1153 = vld [vmem:[#allocation3 + $0x8c] sm:$0xf]
        %v1154 = vld [vmem:[#allocation3 + $0x90] sm:$0xf]
        %v1155 = vld [vmem:[#allocation3 + $0x94] sm:$0xf]
        %v1156 = vld [vmem:[#allocation3 + $0x98] sm:$0xf]
        %v1157 = vld [vmem:[#allocation3 + $0x9c] sm:$0xf]
        %v1158 = vld [vmem:[#allocation3 + $0xa0] sm:$0xf]
        %v1159 = vld [vmem:[#allocation3 + $0xa4] sm:$0xf]
        %v1160 = vld [vmem:[#allocation3 + $0xa8] sm:$0xf]
        %v1161 = vld [vmem:[#allocation3 + $0xac] sm:$0xf]
        %v1162 = vld [vmem:[#allocation3 + $0xb0] sm:$0xf]
        %v1163 = vld [vmem:[#allocation3 + $0xb4] sm:$0xf]
        %v1164 = vld [vmem:[#allocation3 + $0xb8] sm:$0xf]
        %v1165 = vld [vmem:[#allocation3 + $0xbc] sm:$0xf]
        %v1166 = vunpack.c.l.b16 %v1121
        %v1167 = vunpack.c.l.b16 %v1125
        %v1168 = vunpack.c.l.b16 %v1129
        %v1169 = vunpack.c.l.b16 %v1133
        %v1170 = vunpack.c.l.b16 %v1137
        %v1171 = vunpack.c.l.b16 %v1141
        %v1172 = vunpack.c.l.b16 %v1145
        %v1173 = vunpack.c.l.b16 %v1149
        %v1174 = vpack.c.b16 %v1167, %v1166
        %v1175 = vpack.c.b16 %v1169, %v1168
        %v1176 = vpack.c.b16 %v1171, %v1170
        %v1177 = vpack.c.b16 %v1173, %v1172
        %v1198 = vunpack.c.l.b16 %v1150
        %v1199 = vunpack.c.l.b16 %v1151
        %v1200 = vunpack.c.l.b16 %v1152
        %v1201 = vunpack.c.l.b16 %v1153
        %v1202 = vunpack.c.l.b16 %v1154
        %v1203 = vunpack.c.l.b16 %v1155
        %v1204 = vunpack.c.l.b16 %v1156
        %v1205 = vunpack.c.l.b16 %v1157
        %v1206 = vunpack.c.l.b16 %v1158
        %v1207 = vunpack.c.l.b16 %v1159
        %v1208 = vunpack.c.l.b16 %v1160
        %v1209 = vunpack.c.l.b16 %v1161
        %v1210 = vunpack.c.l.b16 %v1162
        %v1211 = vunpack.c.l.b16 %v1163
        %v1212 = vunpack.c.l.b16 %v1164
        %v1213 = vunpack.c.l.b16 %v1165
        %v1214 = vpack.c.b16 %v1199, %v1198
        %v1215 = vpack.c.b16 %v1201, %v1200
        %v1216 = vpack.c.b16 %v1203, %v1202
        %v1217 = vpack.c.b16 %v1205, %v1204
        %v1218 = vpack.c.b16 %v1207, %v1206
        %v1219 = vpack.c.b16 %v1209, %v1208
        %v1220 = vpack.c.b16 %v1211, %v1210
        %v1221 = vpack.c.b16 %v1213, %v1212
        %1230 = vmatprep.subr.bf16.mxu0 0
        %1231 = vmatpush1.bf16.msra.mxu0 %v1214
        %1232 = vmatprep.subr.bf16.mxu0 0
        %1233 = vmatpush1.bf16.msra.mxu0 %v1215
        %1234 = vmatprep.subr.bf16.mxu0 0
        %1235 = vmatpush1.bf16.msra.mxu0 %v1216
        %1236 = vmatprep.subr.bf16.mxu0 0
        %1237 = vmatpush1.bf16.msra.mxu0 %v1217
        %1238 = vmatprep.subr.bf16.mxu0 0
        %1239 = vmatpush1.bf16.msra.mxu0 %v1218
        %1240 = vmatprep.subr.bf16.mxu0 0
        %1241 = vmatpush1.bf16.msra.mxu0 %v1219
        %1242 = vmatprep.subr.bf16.mxu0 0
        %1243 = vmatpush1.bf16.msra.mxu0 %v1220
        %1244 = vmatprep.subr.bf16.mxu0 0
        %1245 = vmatpush1.bf16.msra.mxu0 %v1221
        %1246 = vmatprep.subr.bf16.mxu0 0
        %1247 = vmatpush1.bf16.msra.mxu0 0
        %1248 = vmatprep.subr.bf16.mxu0 0
        %1249 = vmatpush1.bf16.msra.mxu0 0
        %1250 = vmatprep.subr.bf16.mxu0 0
        %1251 = vmatpush1.bf16.msra.mxu0 0
        %1252 = vmatprep.subr.bf16.mxu0 0
        %1253 = vmatpush1.bf16.msra.mxu0 0
        %1254 = vmatprep.subr.bf16.mxu0 0
        %1255 = vmatpush1.bf16.msra.mxu0 0
        %1256 = vmatprep.subr.bf16.mxu0 0
        %1257 = vmatpush1.bf16.msra.mxu0 0
        %1258 = vmatprep.subr.bf16.mxu0 0
        %1259 = vmatpush1.bf16.msra.mxu0 0
        %1260 = vmatprep.subr.bf16.mxu0 0
        %1261 = vmatpush1.bf16.msra.mxu0 0
        %1262 = vmatprep.mubr.bf16.mxu0 0
        %1263 = vmatmul.mubr.bf16.gmra.mrb[0].mxu0 %v1174
        %v1264 = vpop.f32.mrb[0].mxu0
        %v1265 = vadd.f32 0.0, %v1264
        %v1266 = vpop.f32.mrb[0].mxu0
        %v1267 = vpop.f32.mrb[0].mxu0
        %v1268 = vadd.f32 0.0, %v1267
        %v1269 = vpop.f32.mrb[0].mxu0
        %1270 = vmatprep.mubr.bf16.mxu0 0
        %1271 = vmatmul.mubr.bf16.gmra.mrb[0].mxu0 %v1175
        %v1272 = vpop.f32.mrb[0].mxu0
        %v1273 = vadd.f32 0.0, %v1272
        %v1274 = vpop.f32.mrb[0].mxu0
        %v1275 = vpop.f32.mrb[0].mxu0
        %v1276 = vadd.f32 0.0, %v1275
        %v1277 = vpop.f32.mrb[0].mxu0
        %1278 = vmatprep.mubr.bf16.mxu0 0
        %1279 = vmatmul.mubr.bf16.gmra.mrb[0].mxu0 %v1176
        %v1280 = vpop.f32.mrb[0].mxu0
        %v1281 = vadd.f32 0.0, %v1280
        %v1282 = vpop.f32.mrb[0].mxu0
        %v1283 = vpop.f32.mrb[0].mxu0
        %v1284 = vadd.f32 0.0, %v1283
        %v1285 = vpop.f32.mrb[0].mxu0
        %1286 = vmatprep.mubr.bf16.mxu0 0
        %1287 = vmatmul.mubr.bf16.gmra.mrb[0].mxu0 %v1177
        %v1288 = vpop.f32.mrb[0].mxu0
        %v1289 = vadd.f32 0.0, %v1288
        %v1290 = vpop.f32.mrb[0].mxu0
        %v1291 = vpop.f32.mrb[0].mxu0
        %v1292 = vadd.f32 0.0, %v1291
        %v1293 = vpop.f32.mrb[0].mxu0
        %1294 = vdwg.mxu0
        %v1295 = vadd.f32 %v1061, %v1265
        %v1296 = vadd.f32 %v1064, %v1268
        %v1297 = vadd.f32 %v1069, %v1273
        %v1298 = vadd.f32 %v1072, %v1276
        %v1299 = vadd.f32 %v1077, %v1281
        %v1300 = vadd.f32 %v1080, %v1284
        %v1301 = vadd.f32 %v1085, %v1289
        %v1302 = vadd.f32 %v1088, %v1292
        %v1303 = vld [vmem:[%s458] sm:$0xf]
        %v1304 = vld [vmem:[%s458 + $0x8] sm:$0xf]
        %v1305 = vld [vmem:[%s458 + $0x10] sm:$0xf]
        %v1306 = vld [vmem:[%s458 + $0x18] sm:$0xf]
        %v1307 = vld [vmem:[%s458 + $0x20] sm:$0xf]
        %v1308 = vld [vmem:[%s458 + $0x28] sm:$0xf]
        %v1309 = vld [vmem:[%s458 + $0x30] sm:$0xf]
        %v1310 = vld [vmem:[%s458 + $0x38] sm:$0xf]
        %v1311 = vld [vmem:[#allocation3 + $0xc0] sm:$0xf]
        %v1312 = vld [vmem:[#allocation3 + $0xc4] sm:$0xf]
        %v1313 = vld [vmem:[#allocation3 + $0xc8] sm:$0xf]
        %v1314 = vld [vmem:[#allocation3 + $0xcc] sm:$0xf]
        %v1315 = vld [vmem:[#allocation3 + $0xd0] sm:$0xf]
        %v1316 = vld [vmem:[#allocation3 + $0xd4] sm:$0xf]
        %v1317 = vld [vmem:[#allocation3 + $0xd8] sm:$0xf]
        %v1318 = vld [vmem:[#allocation3 + $0xdc] sm:$0xf]
        %v1319 = vld [vmem:[#allocation3 + $0xe0] sm:$0xf]
        %v1320 = vld [vmem:[#allocation3 + $0xe4] sm:$0xf]
        %v1321 = vld [vmem:[#allocation3 + $0xe8] sm:$0xf]
        %v1322 = vld [vmem:[#allocation3 + $0xec] sm:$0xf]
        %v1323 = vld [vmem:[#allocation3 + $0xf0] sm:$0xf]
        %v1324 = vld [vmem:[#allocation3 + $0xf4] sm:$0xf]
        %v1325 = vld [vmem:[#allocation3 + $0xf8] sm:$0xf]
        %v1326 = vld [vmem:[#allocation3 + $0xfc] sm:$0xf]
        %v1335 = vunpack.c.l.b16 %v1303
        %v1336 = vunpack.c.l.b16 %v1304
        %v1337 = vunpack.c.l.b16 %v1305
        %v1338 = vunpack.c.l.b16 %v1306
        %v1339 = vunpack.c.l.b16 %v1307
        %v1340 = vunpack.c.l.b16 %v1308
        %v1341 = vunpack.c.l.b16 %v1309
        %v1342 = vunpack.c.l.b16 %v1310
        %v1343 = vpack.c.b16 %v1336, %v1335
        %v1344 = vpack.c.b16 %v1338, %v1337
        %v1345 = vpack.c.b16 %v1340, %v1339
        %v1346 = vpack.c.b16 %v1342, %v1341
        %v1367 = vunpack.c.l.b16 %v1311
        %v1368 = vunpack.c.l.b16 %v1312
        %v1369 = vunpack.c.l.b16 %v1313
        %v1370 = vunpack.c.l.b16 %v1314
        %v1371 = vunpack.c.l.b16 %v1315
        %v1372 = vunpack.c.l.b16 %v1316
        %v1373 = vunpack.c.l.b16 %v1317
        %v1374 = vunpack.c.l.b16 %v1318
        %v1375 = vunpack.c.l.b16 %v1319
        %v1376 = vunpack.c.l.b16 %v1320
        %v1377 = vunpack.c.l.b16 %v1321
        %v1378 = vunpack.c.l.b16 %v1322
        %v1379 = vunpack.c.l.b16 %v1323
        %v1380 = vunpack.c.l.b16 %v1324
        %v1381 = vunpack.c.l.b16 %v1325
        %v1382 = vunpack.c.l.b16 %v1326
        %v1383 = vpack.c.b16 %v1368, %v1367
        %v1384 = vpack.c.b16 %v1370, %v1369
        %v1385 = vpack.c.b16 %v1372, %v1371
        %v1386 = vpack.c.b16 %v1374, %v1373
        %v1387 = vpack.c.b16 %v1376, %v1375
        %v1388 = vpack.c.b16 %v1378, %v1377
        %v1389 = vpack.c.b16 %v1380, %v1379
        %v1390 = vpack.c.b16 %v1382, %v1381
        %1399 = vmatprep.subr.bf16.mxu0 0
        %1400 = vmatpush1.bf16.msra.mxu0 %v1383
        %1401 = vmatprep.subr.bf16.mxu0 0
        %1402 = vmatpush1.bf16.msra.mxu0 %v1384
        %1403 = vmatprep.subr.bf16.mxu0 0
        %1404 = vmatpush1.bf16.msra.mxu0 %v1385
        %1405 = vmatprep.subr.bf16.mxu0 0
        %1406 = vmatpush1.bf16.msra.mxu0 %v1386
        %1407 = vmatprep.subr.bf16.mxu0 0
        %1408 = vmatpush1.bf16.msra.mxu0 %v1387
        %1409 = vmatprep.subr.bf16.mxu0 0
        %1410 = vmatpush1.bf16.msra.mxu0 %v1388
        %1411 = vmatprep.subr.bf16.mxu0 0
        %1412 = vmatpush1.bf16.msra.mxu0 %v1389
        %1413 = vmatprep.subr.bf16.mxu0 0
        %1414 = vmatpush1.bf16.msra.mxu0 %v1390
        %1415 = vmatprep.subr.bf16.mxu0 0
        %1416 = vmatpush1.bf16.msra.mxu0 0
        %1417 = vmatprep.subr.bf16.mxu0 0
        %1418 = vmatpush1.bf16.msra.mxu0 0
        %1419 = vmatprep.subr.bf16.mxu0 0
        %1420 = vmatpush1.bf16.msra.mxu0 0
        %1421 = vmatprep.subr.bf16.mxu0 0
        %1422 = vmatpush1.bf16.msra.mxu0 0
        %1423 = vmatprep.subr.bf16.mxu0 0
        %1424 = vmatpush1.bf16.msra.mxu0 0
        %1425 = vmatprep.subr.bf16.mxu0 0
        %1426 = vmatpush1.bf16.msra.mxu0 0
        %1427 = vmatprep.subr.bf16.mxu0 0
        %1428 = vmatpush1.bf16.msra.mxu0 0
        %1429 = vmatprep.subr.bf16.mxu0 0
        %1430 = vmatpush1.bf16.msra.mxu0 0
        %1431 = vmatprep.mubr.bf16.mxu0 0
        %1432 = vmatmul.mubr.bf16.gmra.mrb[0].mxu0 %v1343
        %v1433 = vpop.f32.mrb[0].mxu0
        %v1434 = vadd.f32 0.0, %v1433
        %v1435 = vpop.f32.mrb[0].mxu0
        %v1436 = vpop.f32.mrb[0].mxu0
        %v1437 = vadd.f32 0.0, %v1436
        %v1438 = vpop.f32.mrb[0].mxu0
        %1439 = vmatprep.mubr.bf16.mxu0 0
        %1440 = vmatmul.mubr.bf16.gmra.mrb[0].mxu0 %v1344
        %v1441 = vpop.f32.mrb[0].mxu0
        %v1442 = vadd.f32 0.0, %v1441
        %v1443 = vpop.f32.mrb[0].mxu0
        %v1444 = vpop.f32.mrb[0].mxu0
        %v1445 = vadd.f32 0.0, %v1444
        %v1446 = vpop.f32.mrb[0].mxu0
        %1447 = vmatprep.mubr.bf16.mxu0 0
        %1448 = vmatmul.mubr.bf16.gmra.mrb[0].mxu0 %v1345
        %v1449 = vpop.f32.mrb[0].mxu0
        %v1450 = vadd.f32 0.0, %v1449
        %v1451 = vpop.f32.mrb[0].mxu0
        %v1452 = vpop.f32.mrb[0].mxu0
        %v1453 = vadd.f32 0.0, %v1452
        %v1454 = vpop.f32.mrb[0].mxu0
        %1455 = vmatprep.mubr.bf16.mxu0 0
        %1456 = vmatmul.mubr.bf16.gmra.mrb[0].mxu0 %v1346
        %v1457 = vpop.f32.mrb[0].mxu0
        %v1458 = vadd.f32 0.0, %v1457
        %v1459 = vpop.f32.mrb[0].mxu0
        %v1460 = vpop.f32.mrb[0].mxu0
        %v1461 = vadd.f32 0.0, %v1460
        %v1462 = vpop.f32.mrb[0].mxu0
        %1463 = vdwg.mxu0
        %v1464 = vadd.f32 %v1295, %v1434
        %v1465 = vadd.f32 %v1296, %v1437
        %v1466 = vadd.f32 %v1297, %v1442
        %v1467 = vadd.f32 %v1298, %v1445
        %v1468 = vadd.f32 %v1299, %v1450
        %v1469 = vadd.f32 %v1300, %v1453
        %v1470 = vadd.f32 %v1301, %v1458
        %v1471 = vadd.f32 %v1302, %v1461
        %v1472 = vld [vmem:[%s458] sm:$0xf]
        %v1473 = vld [vmem:[%s458 + $0x4] sm:$0x1]
        %v1474 = vld [vmem:[%s458 + $0x8] sm:$0xf]
        %v1475 = vld [vmem:[%s458 + $0xc] sm:$0x1]
        %v1476 = vld [vmem:[%s458 + $0x10] sm:$0xf]
        %v1477 = vld [vmem:[%s458 + $0x14] sm:$0x1]
        %v1478 = vld [vmem:[%s458 + $0x18] sm:$0xf]
        %v1479 = vld [vmem:[%s458 + $0x1c] sm:$0x1]
        %v1480 = vld [vmem:[%s458 + $0x20] sm:$0xf]
        %v1481 = vld [vmem:[%s458 + $0x24] sm:$0x1]
        %v1482 = vld [vmem:[%s458 + $0x28] sm:$0xf]
        %v1483 = vld [vmem:[%s458 + $0x2c] sm:$0x1]
        %v1484 = vld [vmem:[%s458 + $0x30] sm:$0xf]
        %v1485 = vld [vmem:[%s458 + $0x34] sm:$0x1]
        %v1486 = vld [vmem:[%s458 + $0x38] sm:$0xf]
        %v1487 = vld [vmem:[%s458 + $0x3c] sm:$0x1]
        %v1489 = vshrl.u32 %v1472, 16
        %v1491 = vrot.slane %v1489, 4
        %v1492 = vshll.u32 %v1472, 16
        %v1494 = vrot.slane %v1492, 5
        %v1495 = vor.u32 %v1491, %v1494
        %v1496 = vrot.slane %v1495, 4
        %v1498 = vshll.u32 %v1473, 16
        %v1500 = vrot.slane %v1498, 5
        %v1501 = vsel %vm696, %v1496, %v1500
        %v1503 = vshrl.u32 %v1474, 16
        %v1505 = vrot.slane %v1503, 4
        %v1506 = vshll.u32 %v1474, 16
        %v1508 = vrot.slane %v1506, 5
        %v1509 = vor.u32 %v1505, %v1508
        %v1510 = vrot.slane %v1509, 4
        %v1512 = vshll.u32 %v1475, 16
        %v1514 = vrot.slane %v1512, 5
        %v1515 = vsel %vm696, %v1510, %v1514
        %v1517 = vshrl.u32 %v1476, 16
        %v1519 = vrot.slane %v1517, 4
        %v1520 = vshll.u32 %v1476, 16
        %v1522 = vrot.slane %v1520, 5
        %v1523 = vor.u32 %v1519, %v1522
        %v1524 = vrot.slane %v1523, 4
        %v1526 = vshll.u32 %v1477, 16
        %v1528 = vrot.slane %v1526, 5
        %v1529 = vsel %vm696, %v1524, %v1528
        %v1531 = vshrl.u32 %v1478, 16
        %v1533 = vrot.slane %v1531, 4
        %v1534 = vshll.u32 %v1478, 16
        %v1536 = vrot.slane %v1534, 5
        %v1537 = vor.u32 %v1533, %v1536
        %v1538 = vrot.slane %v1537, 4
        %v1540 = vshll.u32 %v1479, 16
        %v1542 = vrot.slane %v1540, 5
        %v1543 = vsel %vm696, %v1538, %v1542
        %v1545 = vshrl.u32 %v1480, 16
        %v1547 = vrot.slane %v1545, 4
        %v1548 = vshll.u32 %v1480, 16
        %v1550 = vrot.slane %v1548, 5
        %v1551 = vor.u32 %v1547, %v1550
        %v1552 = vrot.slane %v1551, 4
        %v1554 = vshll.u32 %v1481, 16
        %v1556 = vrot.slane %v1554, 5
        %v1557 = vsel %vm696, %v1552, %v1556
        %v1559 = vshrl.u32 %v1482, 16
        %v1561 = vrot.slane %v1559, 4
        %v1562 = vshll.u32 %v1482, 16
        %v1564 = vrot.slane %v1562, 5
        %v1565 = vor.u32 %v1561, %v1564
        %v1566 = vrot.slane %v1565, 4
        %v1568 = vshll.u32 %v1483, 16
        %v1570 = vrot.slane %v1568, 5
        %v1571 = vsel %vm696, %v1566, %v1570
        %v1573 = vshrl.u32 %v1484, 16
        %v1575 = vrot.slane %v1573, 4
        %v1576 = vshll.u32 %v1484, 16
        %v1578 = vrot.slane %v1576, 5
        %v1579 = vor.u32 %v1575, %v1578
        %v1580 = vrot.slane %v1579, 4
        %v1582 = vshll.u32 %v1485, 16
        %v1584 = vrot.slane %v1582, 5
        %v1585 = vsel %vm696, %v1580, %v1584
        %v1587 = vshrl.u32 %v1486, 16
        %v1589 = vrot.slane %v1587, 4
        %v1590 = vshll.u32 %v1486, 16
        %v1592 = vrot.slane %v1590, 5
        %v1593 = vor.u32 %v1589, %v1592
        %v1594 = vrot.slane %v1593, 4
        %v1596 = vshll.u32 %v1487, 16
        %v1598 = vrot.slane %v1596, 5
        %v1599 = vsel %vm696, %v1594, %v1598
        %v1600 = vld [vmem:[#allocation3 + $0x100] sm:$0xf]
        %v1601 = vld [vmem:[#allocation3 + $0x104] sm:$0xf]
        %v1602 = vld [vmem:[#allocation3 + $0x108] sm:$0xf]
        %v1603 = vld [vmem:[#allocation3 + $0x10c] sm:$0xf]
        %v1604 = vld [vmem:[#allocation3 + $0x110] sm:$0xf]
        %v1605 = vld [vmem:[#allocation3 + $0x114] sm:$0xf]
        %v1606 = vld [vmem:[#allocation3 + $0x118] sm:$0xf]
        %v1607 = vld [vmem:[#allocation3 + $0x11c] sm:$0xf]
        %v1608 = vld [vmem:[#allocation3 + $0x120] sm:$0xf]
        %v1609 = vld [vmem:[#allocation3 + $0x124] sm:$0xf]
        %v1610 = vld [vmem:[#allocation3 + $0x128] sm:$0xf]
        %v1611 = vld [vmem:[#allocation3 + $0x12c] sm:$0xf]
        %v1612 = vld [vmem:[#allocation3 + $0x130] sm:$0xf]
        %v1613 = vld [vmem:[#allocation3 + $0x134] sm:$0xf]
        %v1614 = vld [vmem:[#allocation3 + $0x138] sm:$0xf]
        %v1615 = vld [vmem:[#allocation3 + $0x13c] sm:$0xf]
        %v1616 = vunpack.c.l.b16 %v1501
        %v1617 = vunpack.c.l.b16 %v1515
        %v1618 = vunpack.c.l.b16 %v1529
        %v1619 = vunpack.c.l.b16 %v1543
        %v1620 = vunpack.c.l.b16 %v1557
        %v1621 = vunpack.c.l.b16 %v1571
        %v1622 = vunpack.c.l.b16 %v1585
        %v1623 = vunpack.c.l.b16 %v1599
        %v1624 = vpack.c.b16 %v1617, %v1616
        %v1625 = vpack.c.b16 %v1619, %v1618
        %v1626 = vpack.c.b16 %v1621, %v1620
        %v1627 = vpack.c.b16 %v1623, %v1622
        %v1648 = vunpack.c.l.b16 %v1600
        %v1649 = vunpack.c.l.b16 %v1601
        %v1650 = vunpack.c.l.b16 %v1602
        %v1651 = vunpack.c.l.b16 %v1603
        %v1652 = vunpack.c.l.b16 %v1604
        %v1653 = vunpack.c.l.b16 %v1605
        %v1654 = vunpack.c.l.b16 %v1606
        %v1655 = vunpack.c.l.b16 %v1607
        %v1656 = vunpack.c.l.b16 %v1608
        %v1657 = vunpack.c.l.b16 %v1609
        %v1658 = vunpack.c.l.b16 %v1610
        %v1659 = vunpack.c.l.b16 %v1611
        %v1660 = vunpack.c.l.b16 %v1612
        %v1661 = vunpack.c.l.b16 %v1613
        %v1662 = vunpack.c.l.b16 %v1614
        %v1663 = vunpack.c.l.b16 %v1615
        %v1664 = vpack.c.b16 %v1649, %v1648
        %v1665 = vpack.c.b16 %v1651, %v1650
        %v1666 = vpack.c.b16 %v1653, %v1652
        %v1667 = vpack.c.b16 %v1655, %v1654
        %v1668 = vpack.c.b16 %v1657, %v1656
        %v1669 = vpack.c.b16 %v1659, %v1658
        %v1670 = vpack.c.b16 %v1661, %v1660
        %v1671 = vpack.c.b16 %v1663, %v1662
        %1680 = vmatprep.subr.bf16.mxu0 0
        %1681 = vmatpush1.bf16.msra.mxu0 %v1664
        %1682 = vmatprep.subr.bf16.mxu0 0
        %1683 = vmatpush1.bf16.msra.mxu0 %v1665
        %1684 = vmatprep.subr.bf16.mxu0 0
        %1685 = vmatpush1.bf16.msra.mxu0 %v1666
        %1686 = vmatprep.subr.bf16.mxu0 0
        %1687 = vmatpush1.bf16.msra.mxu0 %v1667
        %1688 = vmatprep.subr.bf16.mxu0 0
        %1689 = vmatpush1.bf16.msra.mxu0 %v1668
        %1690 = vmatprep.subr.bf16.mxu0 0
        %1691 = vmatpush1.bf16.msra.mxu0 %v1669
        %1692 = vmatprep.subr.bf16.mxu0 0
        %1693 = vmatpush1.bf16.msra.mxu0 %v1670
        %1694 = vmatprep.subr.bf16.mxu0 0
        %1695 = vmatpush1.bf16.msra.mxu0 %v1671
        %1696 = vmatprep.subr.bf16.mxu0 0
        %1697 = vmatpush1.bf16.msra.mxu0 0
        %1698 = vmatprep.subr.bf16.mxu0 0
        %1699 = vmatpush1.bf16.msra.mxu0 0
        %1700 = vmatprep.subr.bf16.mxu0 0
        %1701 = vmatpush1.bf16.msra.mxu0 0
        %1702 = vmatprep.subr.bf16.mxu0 0
        %1703 = vmatpush1.bf16.msra.mxu0 0
        %1704 = vmatprep.subr.bf16.mxu0 0
        %1705 = vmatpush1.bf16.msra.mxu0 0
        %1706 = vmatprep.subr.bf16.mxu0 0
        %1707 = vmatpush1.bf16.msra.mxu0 0
        %1708 = vmatprep.subr.bf16.mxu0 0
        %1709 = vmatpush1.bf16.msra.mxu0 0
        %1710 = vmatprep.subr.bf16.mxu0 0
        %1711 = vmatpush1.bf16.msra.mxu0 0
        %1712 = vmatprep.mubr.bf16.mxu0 0
        %1713 = vmatmul.mubr.bf16.gmra.mrb[0].mxu0 %v1624
        %v1714 = vpop.f32.mrb[0].mxu0
        %v1715 = vadd.f32 0.0, %v1714
        %v1716 = vpop.f32.mrb[0].mxu0
        %v1717 = vpop.f32.mrb[0].mxu0
        %v1718 = vadd.f32 0.0, %v1717
        %v1719 = vpop.f32.mrb[0].mxu0
        %1720 = vmatprep.mubr.bf16.mxu0 0
        %1721 = vmatmul.mubr.bf16.gmra.mrb[0].mxu0 %v1625
        %v1722 = vpop.f32.mrb[0].mxu0
        %v1723 = vadd.f32 0.0, %v1722
        %v1724 = vpop.f32.mrb[0].mxu0
        %v1725 = vpop.f32.mrb[0].mxu0
        %v1726 = vadd.f32 0.0, %v1725
        %v1727 = vpop.f32.mrb[0].mxu0
        %1728 = vmatprep.mubr.bf16.mxu0 0
        %1729 = vmatmul.mubr.bf16.gmra.mrb[0].mxu0 %v1626
        %v1730 = vpop.f32.mrb[0].mxu0
        %v1731 = vadd.f32 0.0, %v1730
        %v1732 = vpop.f32.mrb[0].mxu0
        %v1733 = vpop.f32.mrb[0].mxu0
        %v1734 = vadd.f32 0.0, %v1733
        %v1735 = vpop.f32.mrb[0].mxu0
        %1736 = vmatprep.mubr.bf16.mxu0 0
        %1737 = vmatmul.mubr.bf16.gmra.mrb[0].mxu0 %v1627
        %v1738 = vpop.f32.mrb[0].mxu0
        %v1739 = vadd.f32 0.0, %v1738
        %v1740 = vpop.f32.mrb[0].mxu0
        %v1741 = vpop.f32.mrb[0].mxu0
        %v1742 = vadd.f32 0.0, %v1741
        %v1743 = vpop.f32.mrb[0].mxu0
        %1744 = vdwg.mxu0
        %v1745 = vadd.f32 %v1464, %v1715
        %v1746 = vadd.f32 %v1465, %v1718
        %v1747 = vadd.f32 %v1466, %v1723
        %v1748 = vadd.f32 %v1467, %v1726
        %v1749 = vadd.f32 %v1468, %v1731
        %v1750 = vadd.f32 %v1469, %v1734
        %v1751 = vadd.f32 %v1470, %v1739
        %v1752 = vadd.f32 %v1471, %v1742
        %v1753 = vld [vmem:[%s458] sm:$0xe]
        %v1754 = vld [vmem:[%s458 + $0x8] sm:$0xe]
        %v1755 = vld [vmem:[%s458 + $0x10] sm:$0xe]
        %v1756 = vld [vmem:[%s458 + $0x18] sm:$0xe]
        %v1757 = vld [vmem:[%s458 + $0x20] sm:$0xe]
        %v1758 = vld [vmem:[%s458 + $0x28] sm:$0xe]
        %v1759 = vld [vmem:[%s458 + $0x30] sm:$0xe]
        %v1760 = vld [vmem:[%s458 + $0x38] sm:$0xe]
        %v1777 = vrot.slane %v1753, 5
        %v1778 = vrot.slane %v1777, 4
        %v1779 = vrot.slane %v1473, 5
        %v1780 = vsel %vm1117, %v1778, %v1779
        %v1781 = vrot.slane %v1754, 5
        %v1782 = vrot.slane %v1781, 4
        %v1783 = vrot.slane %v1475, 5
        %v1784 = vsel %vm1117, %v1782, %v1783
        %v1785 = vrot.slane %v1755, 5
        %v1786 = vrot.slane %v1785, 4
        %v1787 = vrot.slane %v1477, 5
        %v1788 = vsel %vm1117, %v1786, %v1787
        %v1789 = vrot.slane %v1756, 5
        %v1790 = vrot.slane %v1789, 4
        %v1791 = vrot.slane %v1479, 5
        %v1792 = vsel %vm1117, %v1790, %v1791
        %v1793 = vrot.slane %v1757, 5
        %v1794 = vrot.slane %v1793, 4
        %v1795 = vrot.slane %v1481, 5
        %v1796 = vsel %vm1117, %v1794, %v1795
        %v1797 = vrot.slane %v1758, 5
        %v1798 = vrot.slane %v1797, 4
        %v1799 = vrot.slane %v1483, 5
        %v1800 = vsel %vm1117, %v1798, %v1799
        %v1801 = vrot.slane %v1759, 5
        %v1802 = vrot.slane %v1801, 4
        %v1803 = vrot.slane %v1485, 5
        %v1804 = vsel %vm1117, %v1802, %v1803
        %v1805 = vrot.slane %v1760, 5
        %v1806 = vrot.slane %v1805, 4
        %v1807 = vrot.slane %v1487, 5
        %v1808 = vsel %vm1117, %v1806, %v1807
        %v1809 = vld [vmem:[#allocation3 + $0x140] sm:$0xf]
        %v1810 = vld [vmem:[#allocation3 + $0x144] sm:$0xf]
        %v1811 = vld [vmem:[#allocation3 + $0x148] sm:$0xf]
        %v1812 = vld [vmem:[#allocation3 + $0x14c] sm:$0xf]
        %v1813 = vld [vmem:[#allocation3 + $0x150] sm:$0xf]
        %v1814 = vld [vmem:[#allocation3 + $0x154] sm:$0xf]
        %v1815 = vld [vmem:[#allocation3 + $0x158] sm:$0xf]
        %v1816 = vld [vmem:[#allocation3 + $0x15c] sm:$0xf]
        %v1817 = vld [vmem:[#allocation3 + $0x160] sm:$0xf]
        %v1818 = vld [vmem:[#allocation3 + $0x164] sm:$0xf]
        %v1819 = vld [vmem:[#allocation3 + $0x168] sm:$0xf]
        %v1820 = vld [vmem:[#allocation3 + $0x16c] sm:$0xf]
        %v1821 = vld [vmem:[#allocation3 + $0x170] sm:$0xf]
        %v1822 = vld [vmem:[#allocation3 + $0x174] sm:$0xf]
        %v1823 = vld [vmem:[#allocation3 + $0x178] sm:$0xf]
        %v1824 = vld [vmem:[#allocation3 + $0x17c] sm:$0xf]
        %v1825 = vunpack.c.l.b16 %v1780
        %v1826 = vunpack.c.l.b16 %v1784
        %v1827 = vunpack.c.l.b16 %v1788
        %v1828 = vunpack.c.l.b16 %v1792
        %v1829 = vunpack.c.l.b16 %v1796
        %v1830 = vunpack.c.l.b16 %v1800
        %v1831 = vunpack.c.l.b16 %v1804
        %v1832 = vunpack.c.l.b16 %v1808
        %v1833 = vpack.c.b16 %v1826, %v1825
        %v1834 = vpack.c.b16 %v1828, %v1827
        %v1835 = vpack.c.b16 %v1830, %v1829
        %v1836 = vpack.c.b16 %v1832, %v1831
        %v1857 = vunpack.c.l.b16 %v1809
        %v1858 = vunpack.c.l.b16 %v1810
        %v1859 = vunpack.c.l.b16 %v1811
        %v1860 = vunpack.c.l.b16 %v1812
        %v1861 = vunpack.c.l.b16 %v1813
        %v1862 = vunpack.c.l.b16 %v1814
        %v1863 = vunpack.c.l.b16 %v1815
        %v1864 = vunpack.c.l.b16 %v1816
        %v1865 = vunpack.c.l.b16 %v1817
        %v1866 = vunpack.c.l.b16 %v1818
        %v1867 = vunpack.c.l.b16 %v1819
        %v1868 = vunpack.c.l.b16 %v1820
        %v1869 = vunpack.c.l.b16 %v1821
        %v1870 = vunpack.c.l.b16 %v1822
        %v1871 = vunpack.c.l.b16 %v1823
        %v1872 = vunpack.c.l.b16 %v1824
        %v1873 = vpack.c.b16 %v1858, %v1857
        %v1874 = vpack.c.b16 %v1860, %v1859
        %v1875 = vpack.c.b16 %v1862, %v1861
        %v1876 = vpack.c.b16 %v1864, %v1863
        %v1877 = vpack.c.b16 %v1866, %v1865
        %v1878 = vpack.c.b16 %v1868, %v1867
        %v1879 = vpack.c.b16 %v1870, %v1869
        %v1880 = vpack.c.b16 %v1872, %v1871
        %1889 = vmatprep.subr.bf16.mxu0 0
        %1890 = vmatpush1.bf16.msra.mxu0 %v1873
        %1891 = vmatprep.subr.bf16.mxu0 0
        %1892 = vmatpush1.bf16.msra.mxu0 %v1874
        %1893 = vmatprep.subr.bf16.mxu0 0
        %1894 = vmatpush1.bf16.msra.mxu0 %v1875
        %1895 = vmatprep.subr.bf16.mxu0 0
        %1896 = vmatpush1.bf16.msra.mxu0 %v1876
        %1897 = vmatprep.subr.bf16.mxu0 0
        %1898 = vmatpush1.bf16.msra.mxu0 %v1877
        %1899 = vmatprep.subr.bf16.mxu0 0
        %1900 = vmatpush1.bf16.msra.mxu0 %v1878
        %1901 = vmatprep.subr.bf16.mxu0 0
        %1902 = vmatpush1.bf16.msra.mxu0 %v1879
        %1903 = vmatprep.subr.bf16.mxu0 0
        %1904 = vmatpush1.bf16.msra.mxu0 %v1880
        %1905 = vmatprep.subr.bf16.mxu0 0
        %1906 = vmatpush1.bf16.msra.mxu0 0
        %1907 = vmatprep.subr.bf16.mxu0 0
        %1908 = vmatpush1.bf16.msra.mxu0 0
        %1909 = vmatprep.subr.bf16.mxu0 0
        %1910 = vmatpush1.bf16.msra.mxu0 0
        %1911 = vmatprep.subr.bf16.mxu0 0
        %1912 = vmatpush1.bf16.msra.mxu0 0
        %1913 = vmatprep.subr.bf16.mxu0 0
        %1914 = vmatpush1.bf16.msra.mxu0 0
        %1915 = vmatprep.subr.bf16.mxu0 0
        %1916 = vmatpush1.bf16.msra.mxu0 0
        %1917 = vmatprep.subr.bf16.mxu0 0
        %1918 = vmatpush1.bf16.msra.mxu0 0
        %1919 = vmatprep.subr.bf16.mxu0 0
        %1920 = vmatpush1.bf16.msra.mxu0 0
        %1921 = vmatprep.mubr.bf16.mxu0 0
        %1922 = vmatmul.mubr.bf16.gmra.mrb[0].mxu0 %v1833
        %v1923 = vpop.f32.mrb[0].mxu0
        %v1924 = vadd.f32 0.0, %v1923
        %v1925 = vpop.f32.mrb[0].mxu0
        %v1926 = vpop.f32.mrb[0].mxu0
        %v1927 = vadd.f32 0.0, %v1926
        %v1928 = vpop.f32.mrb[0].mxu0
        %1929 = vmatprep.mubr.bf16.mxu0 0
        %1930 = vmatmul.mubr.bf16.gmra.mrb[0].mxu0 %v1834
        %v1931 = vpop.f32.mrb[0].mxu0
        %v1932 = vadd.f32 0.0, %v1931
        %v1933 = vpop.f32.mrb[0].mxu0
        %v1934 = vpop.f32.mrb[0].mxu0
        %v1935 = vadd.f32 0.0, %v1934
        %v1936 = vpop.f32.mrb[0].mxu0
        %1937 = vmatprep.mubr.bf16.mxu0 0
        %1938 = vmatmul.mubr.bf16.gmra.mrb[0].mxu0 %v1835
        %v1939 = vpop.f32.mrb[0].mxu0
        %v1940 = vadd.f32 0.0, %v1939
        %v1941 = vpop.f32.mrb[0].mxu0
        %v1942 = vpop.f32.mrb[0].mxu0
        %v1943 = vadd.f32 0.0, %v1942
        %v1944 = vpop.f32.mrb[0].mxu0
        %1945 = vmatprep.mubr.bf16.mxu0 0
        %1946 = vmatmul.mubr.bf16.gmra.mrb[0].mxu0 %v1836
        %v1947 = vpop.f32.mrb[0].mxu0
        %v1948 = vadd.f32 0.0, %v1947
        %v1949 = vpop.f32.mrb[0].mxu0
        %v1950 = vpop.f32.mrb[0].mxu0
        %v1951 = vadd.f32 0.0, %v1950
        %v1952 = vpop.f32.mrb[0].mxu0
        %1953 = vdwg.mxu0
        %v1954 = vadd.f32 %v1745, %v1924
        %v1955 = vadd.f32 %v1746, %v1927
        %v1956 = vadd.f32 %v1747, %v1932
        %v1957 = vadd.f32 %v1748, %v1935
        %v1958 = vadd.f32 %v1749, %v1940
        %v1959 = vadd.f32 %v1750, %v1943
        %v1960 = vadd.f32 %v1751, %v1948
        %v1961 = vadd.f32 %v1752, %v1951
        %s1962 = scalar_lea.vmem [#allocation2], 16
        %v1963 = vld [vmem:[%s1962] sm:$0xf]
        %v1964 = vld [vmem:[%s1962 + $0x8] sm:$0xf]
        %v1965 = vld [vmem:[%s1962 + $0x10] sm:$0xf]
        %v1966 = vld [vmem:[%s1962 + $0x18] sm:$0xf]
        %v1967 = vld [vmem:[%s1962 + $0x20] sm:$0xf]
        %v1968 = vld [vmem:[%s1962 + $0x28] sm:$0xf]
        %v1969 = vld [vmem:[%s1962 + $0x30] sm:$0xf]
        %v1970 = vld [vmem:[%s1962 + $0x38] sm:$0xf]
        %v1971 = vld [vmem:[#allocation3 + $0x180] sm:$0xf]
        %v1972 = vld [vmem:[#allocation3 + $0x184] sm:$0xf]
        %v1973 = vld [vmem:[#allocation3 + $0x188] sm:$0xf]
        %v1974 = vld [vmem:[#allocation3 + $0x18c] sm:$0xf]
        %v1975 = vld [vmem:[#allocation3 + $0x190] sm:$0xf]
        %v1976 = vld [vmem:[#allocation3 + $0x194] sm:$0xf]
        %v1977 = vld [vmem:[#allocation3 + $0x198] sm:$0xf]
        %v1978 = vld [vmem:[#allocation3 + $0x19c] sm:$0xf]
        %v1979 = vld [vmem:[#allocation3 + $0x1a0] sm:$0xf]
        %v1980 = vld [vmem:[#allocation3 + $0x1a4] sm:$0xf]
        %v1981 = vld [vmem:[#allocation3 + $0x1a8] sm:$0xf]
        %v1982 = vld [vmem:[#allocation3 + $0x1ac] sm:$0xf]
        %v1983 = vld [vmem:[#allocation3 + $0x1b0] sm:$0xf]
        %v1984 = vld [vmem:[#allocation3 + $0x1b4] sm:$0xf]
        %v1985 = vld [vmem:[#allocation3 + $0x1b8] sm:$0xf]
        %v1986 = vld [vmem:[#allocation3 + $0x1bc] sm:$0xf]
        %v1995 = vunpack.c.l.b16 %v1963
        %v1996 = vunpack.c.l.b16 %v1964
        %v1997 = vunpack.c.l.b16 %v1965
        %v1998 = vunpack.c.l.b16 %v1966
        %v1999 = vunpack.c.l.b16 %v1967
        %v2000 = vunpack.c.l.b16 %v1968
        %v2001 = vunpack.c.l.b16 %v1969
        %v2002 = vunpack.c.l.b16 %v1970
        %v2003 = vpack.c.b16 %v1996, %v1995
        %v2004 = vpack.c.b16 %v1998, %v1997
        %v2005 = vpack.c.b16 %v2000, %v1999
        %v2006 = vpack.c.b16 %v2002, %v2001
        %v2027 = vunpack.c.l.b16 %v1971
        %v2028 = vunpack.c.l.b16 %v1972
        %v2029 = vunpack.c.l.b16 %v1973
        %v2030 = vunpack.c.l.b16 %v1974
        %v2031 = vunpack.c.l.b16 %v1975
        %v2032 = vunpack.c.l.b16 %v1976
        %v2033 = vunpack.c.l.b16 %v1977
        %v2034 = vunpack.c.l.b16 %v1978
        %v2035 = vunpack.c.l.b16 %v1979
        %v2036 = vunpack.c.l.b16 %v1980
        %v2037 = vunpack.c.l.b16 %v1981
        %v2038 = vunpack.c.l.b16 %v1982
        %v2039 = vunpack.c.l.b16 %v1983
        %v2040 = vunpack.c.l.b16 %v1984
        %v2041 = vunpack.c.l.b16 %v1985
        %v2042 = vunpack.c.l.b16 %v1986
        %v2043 = vpack.c.b16 %v2028, %v2027
        %v2044 = vpack.c.b16 %v2030, %v2029
        %v2045 = vpack.c.b16 %v2032, %v2031
        %v2046 = vpack.c.b16 %v2034, %v2033
        %v2047 = vpack.c.b16 %v2036, %v2035
        %v2048 = vpack.c.b16 %v2038, %v2037
        %v2049 = vpack.c.b16 %v2040, %v2039
        %v2050 = vpack.c.b16 %v2042, %v2041
        %2059 = vmatprep.subr.bf16.mxu0 0
        %2060 = vmatpush1.bf16.msra.mxu0 %v2043
        %2061 = vmatprep.subr.bf16.mxu0 0
        %2062 = vmatpush1.bf16.msra.mxu0 %v2044
        %2063 = vmatprep.subr.bf16.mxu0 0
        %2064 = vmatpush1.bf16.msra.mxu0 %v2045
        %2065 = vmatprep.subr.bf16.mxu0 0
        %2066 = vmatpush1.bf16.msra.mxu0 %v2046
        %2067 = vmatprep.subr.bf16.mxu0 0
        %2068 = vmatpush1.bf16.msra.mxu0 %v2047
        %2069 = vmatprep.subr.bf16.mxu0 0
        %2070 = vmatpush1.bf16.msra.mxu0 %v2048
        %2071 = vmatprep.subr.bf16.mxu0 0
        %2072 = vmatpush1.bf16.msra.mxu0 %v2049
        %2073 = vmatprep.subr.bf16.mxu0 0
        %2074 = vmatpush1.bf16.msra.mxu0 %v2050
        %2075 = vmatprep.subr.bf16.mxu0 0
        %2076 = vmatpush1.bf16.msra.mxu0 0
        %2077 = vmatprep.subr.bf16.mxu0 0
        %2078 = vmatpush1.bf16.msra.mxu0 0
        %2079 = vmatprep.subr.bf16.mxu0 0
        %2080 = vmatpush1.bf16.msra.mxu0 0
        %2081 = vmatprep.subr.bf16.mxu0 0
        %2082 = vmatpush1.bf16.msra.mxu0 0
        %2083 = vmatprep.subr.bf16.mxu0 0
        %2084 = vmatpush1.bf16.msra.mxu0 0
        %2085 = vmatprep.subr.bf16.mxu0 0
        %2086 = vmatpush1.bf16.msra.mxu0 0
        %2087 = vmatprep.subr.bf16.mxu0 0
        %2088 = vmatpush1.bf16.msra.mxu0 0
        %2089 = vmatprep.subr.bf16.mxu0 0
        %2090 = vmatpush1.bf16.msra.mxu0 0
        %2091 = vmatprep.mubr.bf16.mxu0 0
        %2092 = vmatmul.mubr.bf16.gmra.mrb[0].mxu0 %v2003
        %v2093 = vpop.f32.mrb[0].mxu0
        %v2094 = vadd.f32 0.0, %v2093
        %v2095 = vpop.f32.mrb[0].mxu0
        %v2096 = vpop.f32.mrb[0].mxu0
        %v2097 = vadd.f32 0.0, %v2096
        %v2098 = vpop.f32.mrb[0].mxu0
        %2099 = vmatprep.mubr.bf16.mxu0 0
        %2100 = vmatmul.mubr.bf16.gmra.mrb[0].mxu0 %v2004
        %v2101 = vpop.f32.mrb[0].mxu0
        %v2102 = vadd.f32 0.0, %v2101
        %v2103 = vpop.f32.mrb[0].mxu0
        %v2104 = vpop.f32.mrb[0].mxu0
        %v2105 = vadd.f32 0.0, %v2104
        %v2106 = vpop.f32.mrb[0].mxu0
        %2107 = vmatprep.mubr.bf16.mxu0 0
        %2108 = vmatmul.mubr.bf16.gmra.mrb[0].mxu0 %v2005
        %v2109 = vpop.f32.mrb[0].mxu0
        %v2110 = vadd.f32 0.0, %v2109
        %v2111 = vpop.f32.mrb[0].mxu0
        %v2112 = vpop.f32.mrb[0].mxu0
        %v2113 = vadd.f32 0.0, %v2112
        %v2114 = vpop.f32.mrb[0].mxu0
        %2115 = vmatprep.mubr.bf16.mxu0 0
        %2116 = vmatmul.mubr.bf16.gmra.mrb[0].mxu0 %v2006
        %v2117 = vpop.f32.mrb[0].mxu0
        %v2118 = vadd.f32 0.0, %v2117
        %v2119 = vpop.f32.mrb[0].mxu0
        %v2120 = vpop.f32.mrb[0].mxu0
        %v2121 = vadd.f32 0.0, %v2120
        %v2122 = vpop.f32.mrb[0].mxu0
        %2123 = vdwg.mxu0
        %v2124 = vadd.f32 %v1954, %v2094
        %v2125 = vadd.f32 %v1955, %v2097
        %v2126 = vadd.f32 %v1956, %v2102
        %v2127 = vadd.f32 %v1957, %v2105
        %v2128 = vadd.f32 %v1958, %v2110
        %v2129 = vadd.f32 %v1959, %v2113
        %v2130 = vadd.f32 %v1960, %v2118
        %v2131 = vadd.f32 %v1961, %v2121
        %v2132 = vld [vmem:[%s1962] sm:$0xf]
        %v2133 = vld [vmem:[%s1962 + $0x4] sm:$0x1]
        %v2134 = vld [vmem:[%s1962 + $0x8] sm:$0xf]
        %v2135 = vld [vmem:[%s1962 + $0xc] sm:$0x1]
        %v2136 = vld [vmem:[%s1962 + $0x10] sm:$0xf]
        %v2137 = vld [vmem:[%s1962 + $0x14] sm:$0x1]
        %v2138 = vld [vmem:[%s1962 + $0x18] sm:$0xf]
        %v2139 = vld [vmem:[%s1962 + $0x1c] sm:$0x1]
        %v2140 = vld [vmem:[%s1962 + $0x20] sm:$0xf]
        %v2141 = vld [vmem:[%s1962 + $0x24] sm:$0x1]
        %v2142 = vld [vmem:[%s1962 + $0x28] sm:$0xf]
        %v2143 = vld [vmem:[%s1962 + $0x2c] sm:$0x1]
        %v2144 = vld [vmem:[%s1962 + $0x30] sm:$0xf]
        %v2145 = vld [vmem:[%s1962 + $0x34] sm:$0x1]
        %v2146 = vld [vmem:[%s1962 + $0x38] sm:$0xf]
        %v2147 = vld [vmem:[%s1962 + $0x3c] sm:$0x1]
        %v2149 = vshrl.u32 %v2132, 16
        %v2151 = vrot.slane %v2149, 4
        %v2152 = vshll.u32 %v2132, 16
        %v2154 = vrot.slane %v2152, 5
        %v2155 = vor.u32 %v2151, %v2154
        %v2156 = vrot.slane %v2155, 4
        %v2158 = vshll.u32 %v2133, 16
        %v2160 = vrot.slane %v2158, 5
        %v2161 = vsel %vm696, %v2156, %v2160
        %v2163 = vshrl.u32 %v2134, 16
        %v2165 = vrot.slane %v2163, 4
        %v2166 = vshll.u32 %v2134, 16
        %v2168 = vrot.slane %v2166, 5
        %v2169 = vor.u32 %v2165, %v2168
        %v2170 = vrot.slane %v2169, 4
        %v2172 = vshll.u32 %v2135, 16
        %v2174 = vrot.slane %v2172, 5
        %v2175 = vsel %vm696, %v2170, %v2174
        %v2177 = vshrl.u32 %v2136, 16
        %v2179 = vrot.slane %v2177, 4
        %v2180 = vshll.u32 %v2136, 16
        %v2182 = vrot.slane %v2180, 5
        %v2183 = vor.u32 %v2179, %v2182
        %v2184 = vrot.slane %v2183, 4
        %v2186 = vshll.u32 %v2137, 16
        %v2188 = vrot.slane %v2186, 5
        %v2189 = vsel %vm696, %v2184, %v2188
        %v2191 = vshrl.u32 %v2138, 16
        %v2193 = vrot.slane %v2191, 4
        %v2194 = vshll.u32 %v2138, 16
        %v2196 = vrot.slane %v2194, 5
        %v2197 = vor.u32 %v2193, %v2196
        %v2198 = vrot.slane %v2197, 4
        %v2200 = vshll.u32 %v2139, 16
        %v2202 = vrot.slane %v2200, 5
        %v2203 = vsel %vm696, %v2198, %v2202
        %v2205 = vshrl.u32 %v2140, 16
        %v2207 = vrot.slane %v2205, 4
        %v2208 = vshll.u32 %v2140, 16
        %v2210 = vrot.slane %v2208, 5
        %v2211 = vor.u32 %v2207, %v2210
        %v2212 = vrot.slane %v2211, 4
        %v2214 = vshll.u32 %v2141, 16
        %v2216 = vrot.slane %v2214, 5
        %v2217 = vsel %vm696, %v2212, %v2216
        %v2219 = vshrl.u32 %v2142, 16
        %v2221 = vrot.slane %v2219, 4
        %v2222 = vshll.u32 %v2142, 16
        %v2224 = vrot.slane %v2222, 5
        %v2225 = vor.u32 %v2221, %v2224
        %v2226 = vrot.slane %v2225, 4
        %v2228 = vshll.u32 %v2143, 16
        %v2230 = vrot.slane %v2228, 5
        %v2231 = vsel %vm696, %v2226, %v2230
        %v2233 = vshrl.u32 %v2144, 16
        %v2235 = vrot.slane %v2233, 4
        %v2236 = vshll.u32 %v2144, 16
        %v2238 = vrot.slane %v2236, 5
        %v2239 = vor.u32 %v2235, %v2238
        %v2240 = vrot.slane %v2239, 4
        %v2242 = vshll.u32 %v2145, 16
        %v2244 = vrot.slane %v2242, 5
        %v2245 = vsel %vm696, %v2240, %v2244
        %v2247 = vshrl.u32 %v2146, 16
        %v2249 = vrot.slane %v2247, 4
        %v2250 = vshll.u32 %v2146, 16
        %v2252 = vrot.slane %v2250, 5
        %v2253 = vor.u32 %v2249, %v2252
        %v2254 = vrot.slane %v2253, 4
        %v2256 = vshll.u32 %v2147, 16
        %v2258 = vrot.slane %v2256, 5
        %v2259 = vsel %vm696, %v2254, %v2258
        %v2260 = vld [vmem:[#allocation3 + $0x1c0] sm:$0xf]
        %v2261 = vld [vmem:[#allocation3 + $0x1c4] sm:$0xf]
        %v2262 = vld [vmem:[#allocation3 + $0x1c8] sm:$0xf]
        %v2263 = vld [vmem:[#allocation3 + $0x1cc] sm:$0xf]
        %v2264 = vld [vmem:[#allocation3 + $0x1d0] sm:$0xf]
        %v2265 = vld [vmem:[#allocation3 + $0x1d4] sm:$0xf]
        %v2266 = vld [vmem:[#allocation3 + $0x1d8] sm:$0xf]
        %v2267 = vld [vmem:[#allocation3 + $0x1dc] sm:$0xf]
        %v2268 = vld [vmem:[#allocation3 + $0x1e0] sm:$0xf]
        %v2269 = vld [vmem:[#allocation3 + $0x1e4] sm:$0xf]
        %v2270 = vld [vmem:[#allocation3 + $0x1e8] sm:$0xf]
        %v2271 = vld [vmem:[#allocation3 + $0x1ec] sm:$0xf]
        %v2272 = vld [vmem:[#allocation3 + $0x1f0] sm:$0xf]
        %v2273 = vld [vmem:[#allocation3 + $0x1f4] sm:$0xf]
        %v2274 = vld [vmem:[#allocation3 + $0x1f8] sm:$0xf]
        %v2275 = vld [vmem:[#allocation3 + $0x1fc] sm:$0xf]
        %v2276 = vunpack.c.l.b16 %v2161
        %v2277 = vunpack.c.l.b16 %v2175
        %v2278 = vunpack.c.l.b16 %v2189
        %v2279 = vunpack.c.l.b16 %v2203
        %v2280 = vunpack.c.l.b16 %v2217
        %v2281 = vunpack.c.l.b16 %v2231
        %v2282 = vunpack.c.l.b16 %v2245
        %v2283 = vunpack.c.l.b16 %v2259
        %v2284 = vpack.c.b16 %v2277, %v2276
        %v2285 = vpack.c.b16 %v2279, %v2278
        %v2286 = vpack.c.b16 %v2281, %v2280
        %v2287 = vpack.c.b16 %v2283, %v2282
        %v2308 = vunpack.c.l.b16 %v2260
        %v2309 = vunpack.c.l.b16 %v2261
        %v2310 = vunpack.c.l.b16 %v2262
        %v2311 = vunpack.c.l.b16 %v2263
        %v2312 = vunpack.c.l.b16 %v2264
        %v2313 = vunpack.c.l.b16 %v2265
        %v2314 = vunpack.c.l.b16 %v2266
        %v2315 = vunpack.c.l.b16 %v2267
        %v2316 = vunpack.c.l.b16 %v2268
        %v2317 = vunpack.c.l.b16 %v2269
        %v2318 = vunpack.c.l.b16 %v2270
        %v2319 = vunpack.c.l.b16 %v2271
        %v2320 = vunpack.c.l.b16 %v2272
        %v2321 = vunpack.c.l.b16 %v2273
        %v2322 = vunpack.c.l.b16 %v2274
        %v2323 = vunpack.c.l.b16 %v2275
        %v2324 = vpack.c.b16 %v2309, %v2308
        %v2325 = vpack.c.b16 %v2311, %v2310
        %v2326 = vpack.c.b16 %v2313, %v2312
        %v2327 = vpack.c.b16 %v2315, %v2314
        %v2328 = vpack.c.b16 %v2317, %v2316
        %v2329 = vpack.c.b16 %v2319, %v2318
        %v2330 = vpack.c.b16 %v2321, %v2320
        %v2331 = vpack.c.b16 %v2323, %v2322
        %2340 = vmatprep.subr.bf16.mxu0 0
        %2341 = vmatpush1.bf16.msra.mxu0 %v2324
        %2342 = vmatprep.subr.bf16.mxu0 0
        %2343 = vmatpush1.bf16.msra.mxu0 %v2325
        %2344 = vmatprep.subr.bf16.mxu0 0
        %2345 = vmatpush1.bf16.msra.mxu0 %v2326
        %2346 = vmatprep.subr.bf16.mxu0 0
        %2347 = vmatpush1.bf16.msra.mxu0 %v2327
        %2348 = vmatprep.subr.bf16.mxu0 0
        %2349 = vmatpush1.bf16.msra.mxu0 %v2328
        %2350 = vmatprep.subr.bf16.mxu0 0
        %2351 = vmatpush1.bf16.msra.mxu0 %v2329
        %2352 = vmatprep.subr.bf16.mxu0 0
        %2353 = vmatpush1.bf16.msra.mxu0 %v2330
        %2354 = vmatprep.subr.bf16.mxu0 0
        %2355 = vmatpush1.bf16.msra.mxu0 %v2331
        %2356 = vmatprep.subr.bf16.mxu0 0
        %2357 = vmatpush1.bf16.msra.mxu0 0
        %2358 = vmatprep.subr.bf16.mxu0 0
        %2359 = vmatpush1.bf16.msra.mxu0 0
        %2360 = vmatprep.subr.bf16.mxu0 0
        %2361 = vmatpush1.bf16.msra.mxu0 0
        %2362 = vmatprep.subr.bf16.mxu0 0
        %2363 = vmatpush1.bf16.msra.mxu0 0
        %2364 = vmatprep.subr.bf16.mxu0 0
        %2365 = vmatpush1.bf16.msra.mxu0 0
        %2366 = vmatprep.subr.bf16.mxu0 0
        %2367 = vmatpush1.bf16.msra.mxu0 0
        %2368 = vmatprep.subr.bf16.mxu0 0
        %2369 = vmatpush1.bf16.msra.mxu0 0
        %2370 = vmatprep.subr.bf16.mxu0 0
        %2371 = vmatpush1.bf16.msra.mxu0 0
        %2372 = vmatprep.mubr.bf16.mxu0 0
        %2373 = vmatmul.mubr.bf16.gmra.mrb[0].mxu0 %v2284
        %v2374 = vpop.f32.mrb[0].mxu0
        %v2375 = vadd.f32 0.0, %v2374
        %v2376 = vpop.f32.mrb[0].mxu0
        %v2377 = vpop.f32.mrb[0].mxu0
        %v2378 = vadd.f32 0.0, %v2377
        %v2379 = vpop.f32.mrb[0].mxu0
        %2380 = vmatprep.mubr.bf16.mxu0 0
        %2381 = vmatmul.mubr.bf16.gmra.mrb[0].mxu0 %v2285
        %v2382 = vpop.f32.mrb[0].mxu0
        %v2383 = vadd.f32 0.0, %v2382
        %v2384 = vpop.f32.mrb[0].mxu0
        %v2385 = vpop.f32.mrb[0].mxu0
        %v2386 = vadd.f32 0.0, %v2385
        %v2387 = vpop.f32.mrb[0].mxu0
        %2388 = vmatprep.mubr.bf16.mxu0 0
        %2389 = vmatmul.mubr.bf16.gmra.mrb[0].mxu0 %v2286
        %v2390 = vpop.f32.mrb[0].mxu0
        %v2391 = vadd.f32 0.0, %v2390
        %v2392 = vpop.f32.mrb[0].mxu0
        %v2393 = vpop.f32.mrb[0].mxu0
        %v2394 = vadd.f32 0.0, %v2393
        %v2395 = vpop.f32.mrb[0].mxu0
        %2396 = vmatprep.mubr.bf16.mxu0 0
        %2397 = vmatmul.mubr.bf16.gmra.mrb[0].mxu0 %v2287
        %v2398 = vpop.f32.mrb[0].mxu0
        %v2399 = vadd.f32 0.0, %v2398
        %v2400 = vpop.f32.mrb[0].mxu0
        %v2401 = vpop.f32.mrb[0].mxu0
        %v2402 = vadd.f32 0.0, %v2401
        %v2403 = vpop.f32.mrb[0].mxu0
        %2404 = vdwg.mxu0
        %v2405 = vadd.f32 %v2124, %v2375
        %v2406 = vadd.f32 %v2125, %v2378
        %v2407 = vadd.f32 %v2126, %v2383
        %v2408 = vadd.f32 %v2127, %v2386
        %v2409 = vadd.f32 %v2128, %v2391
        %v2410 = vadd.f32 %v2129, %v2394
        %v2411 = vadd.f32 %v2130, %v2399
        %v2412 = vadd.f32 %v2131, %v2402
        %v2413 = vld [vmem:[%s1962] sm:$0xe]
        %v2414 = vld [vmem:[%s1962 + $0x8] sm:$0xe]
        %v2415 = vld [vmem:[%s1962 + $0x10] sm:$0xe]
        %v2416 = vld [vmem:[%s1962 + $0x18] sm:$0xe]
        %v2417 = vld [vmem:[%s1962 + $0x20] sm:$0xe]
        %v2418 = vld [vmem:[%s1962 + $0x28] sm:$0xe]
        %v2419 = vld [vmem:[%s1962 + $0x30] sm:$0xe]
        %v2420 = vld [vmem:[%s1962 + $0x38] sm:$0xe]
        %v2437 = vrot.slane %v2413, 5
        %v2438 = vrot.slane %v2437, 4
        %v2439 = vrot.slane %v2133, 5
        %v2440 = vsel %vm1117, %v2438, %v2439
        %v2441 = vrot.slane %v2414, 5
        %v2442 = vrot.slane %v2441, 4
        %v2443 = vrot.slane %v2135, 5
        %v2444 = vsel %vm1117, %v2442, %v2443
        %v2445 = vrot.slane %v2415, 5
        %v2446 = vrot.slane %v2445, 4
        %v2447 = vrot.slane %v2137, 5
        %v2448 = vsel %vm1117, %v2446, %v2447
        %v2449 = vrot.slane %v2416, 5
        %v2450 = vrot.slane %v2449, 4
        %v2451 = vrot.slane %v2139, 5
        %v2452 = vsel %vm1117, %v2450, %v2451
        %v2453 = vrot.slane %v2417, 5
        %v2454 = vrot.slane %v2453, 4
        %v2455 = vrot.slane %v2141, 5
        %v2456 = vsel %vm1117, %v2454, %v2455
        %v2457 = vrot.slane %v2418, 5
        %v2458 = vrot.slane %v2457, 4
        %v2459 = vrot.slane %v2143, 5
        %v2460 = vsel %vm1117, %v2458, %v2459
        %v2461 = vrot.slane %v2419, 5
        %v2462 = vrot.slane %v2461, 4
        %v2463 = vrot.slane %v2145, 5
        %v2464 = vsel %vm1117, %v2462, %v2463
        %v2465 = vrot.slane %v2420, 5
        %v2466 = vrot.slane %v2465, 4
        %v2467 = vrot.slane %v2147, 5
        %v2468 = vsel %vm1117, %v2466, %v2467
        %v2469 = vld [vmem:[#allocation3 + $0x200] sm:$0xf]
        %v2470 = vld [vmem:[#allocation3 + $0x204] sm:$0xf]
        %v2471 = vld [vmem:[#allocation3 + $0x208] sm:$0xf]
        %v2472 = vld [vmem:[#allocation3 + $0x20c] sm:$0xf]
        %v2473 = vld [vmem:[#allocation3 + $0x210] sm:$0xf]
        %v2474 = vld [vmem:[#allocation3 + $0x214] sm:$0xf]
        %v2475 = vld [vmem:[#allocation3 + $0x218] sm:$0xf]
        %v2476 = vld [vmem:[#allocation3 + $0x21c] sm:$0xf]
        %v2477 = vld [vmem:[#allocation3 + $0x220] sm:$0xf]
        %v2478 = vld [vmem:[#allocation3 + $0x224] sm:$0xf]
        %v2479 = vld [vmem:[#allocation3 + $0x228] sm:$0xf]
        %v2480 = vld [vmem:[#allocation3 + $0x22c] sm:$0xf]
        %v2481 = vld [vmem:[#allocation3 + $0x230] sm:$0xf]
        %v2482 = vld [vmem:[#allocation3 + $0x234] sm:$0xf]
        %v2483 = vld [vmem:[#allocation3 + $0x238] sm:$0xf]
        %v2484 = vld [vmem:[#allocation3 + $0x23c] sm:$0xf]
        %v2485 = vunpack.c.l.b16 %v2440
        %v2486 = vunpack.c.l.b16 %v2444
        %v2487 = vunpack.c.l.b16 %v2448
        %v2488 = vunpack.c.l.b16 %v2452
        %v2489 = vunpack.c.l.b16 %v2456
        %v2490 = vunpack.c.l.b16 %v2460
        %v2491 = vunpack.c.l.b16 %v2464
        %v2492 = vunpack.c.l.b16 %v2468
        %v2493 = vpack.c.b16 %v2486, %v2485
        %v2494 = vpack.c.b16 %v2488, %v2487
        %v2495 = vpack.c.b16 %v2490, %v2489
        %v2496 = vpack.c.b16 %v2492, %v2491
        %v2517 = vunpack.c.l.b16 %v2469
        %v2518 = vunpack.c.l.b16 %v2470
        %v2519 = vunpack.c.l.b16 %v2471
        %v2520 = vunpack.c.l.b16 %v2472
        %v2521 = vunpack.c.l.b16 %v2473
        %v2522 = vunpack.c.l.b16 %v2474
        %v2523 = vunpack.c.l.b16 %v2475
        %v2524 = vunpack.c.l.b16 %v2476
        %v2525 = vunpack.c.l.b16 %v2477
        %v2526 = vunpack.c.l.b16 %v2478
        %v2527 = vunpack.c.l.b16 %v2479
        %v2528 = vunpack.c.l.b16 %v2480
        %v2529 = vunpack.c.l.b16 %v2481
        %v2530 = vunpack.c.l.b16 %v2482
        %v2531 = vunpack.c.l.b16 %v2483
        %v2532 = vunpack.c.l.b16 %v2484
        %v2533 = vpack.c.b16 %v2518, %v2517
        %v2534 = vpack.c.b16 %v2520, %v2519
        %v2535 = vpack.c.b16 %v2522, %v2521
        %v2536 = vpack.c.b16 %v2524, %v2523
        %v2537 = vpack.c.b16 %v2526, %v2525
        %v2538 = vpack.c.b16 %v2528, %v2527
        %v2539 = vpack.c.b16 %v2530, %v2529
        %v2540 = vpack.c.b16 %v2532, %v2531
        %2549 = vmatprep.subr.bf16.mxu0 0
        %2550 = vmatpush1.bf16.msra.mxu0 %v2533
        %2551 = vmatprep.subr.bf16.mxu0 0
        %2552 = vmatpush1.bf16.msra.mxu0 %v2534
        %2553 = vmatprep.subr.bf16.mxu0 0
        %2554 = vmatpush1.bf16.msra.mxu0 %v2535
        %2555 = vmatprep.subr.bf16.mxu0 0
        %2556 = vmatpush1.bf16.msra.mxu0 %v2536
        %2557 = vmatprep.subr.bf16.mxu0 0
        %2558 = vmatpush1.bf16.msra.mxu0 %v2537
        %2559 = vmatprep.subr.bf16.mxu0 0
        %2560 = vmatpush1.bf16.msra.mxu0 %v2538
        %2561 = vmatprep.subr.bf16.mxu0 0
        %2562 = vmatpush1.bf16.msra.mxu0 %v2539
        %2563 = vmatprep.subr.bf16.mxu0 0
        %2564 = vmatpush1.bf16.msra.mxu0 %v2540
        %2565 = vmatprep.subr.bf16.mxu0 0
        %2566 = vmatpush1.bf16.msra.mxu0 0
        %2567 = vmatprep.subr.bf16.mxu0 0
        %2568 = vmatpush1.bf16.msra.mxu0 0
        %2569 = vmatprep.subr.bf16.mxu0 0
        %2570 = vmatpush1.bf16.msra.mxu0 0
        %2571 = vmatprep.subr.bf16.mxu0 0
        %2572 = vmatpush1.bf16.msra.mxu0 0
        %2573 = vmatprep.subr.bf16.mxu0 0
        %2574 = vmatpush1.bf16.msra.mxu0 0
        %2575 = vmatprep.subr.bf16.mxu0 0
        %2576 = vmatpush1.bf16.msra.mxu0 0
        %2577 = vmatprep.subr.bf16.mxu0 0
        %2578 = vmatpush1.bf16.msra.mxu0 0
        %2579 = vmatprep.subr.bf16.mxu0 0
        %2580 = vmatpush1.bf16.msra.mxu0 0
        %2581 = vmatprep.mubr.bf16.mxu0 0
        %2582 = vmatmul.mubr.bf16.gmra.mrb[0].mxu0 %v2493
        %v2583 = vpop.f32.mrb[0].mxu0
        %v2584 = vadd.f32 0.0, %v2583
        %v2585 = vpop.f32.mrb[0].mxu0
        %v2586 = vpop.f32.mrb[0].mxu0
        %v2587 = vadd.f32 0.0, %v2586
        %v2588 = vpop.f32.mrb[0].mxu0
        %2589 = vmatprep.mubr.bf16.mxu0 0
        %2590 = vmatmul.mubr.bf16.gmra.mrb[0].mxu0 %v2494
        %v2591 = vpop.f32.mrb[0].mxu0
        %v2592 = vadd.f32 0.0, %v2591
        %v2593 = vpop.f32.mrb[0].mxu0
        %v2594 = vpop.f32.mrb[0].mxu0
        %v2595 = vadd.f32 0.0, %v2594
        %v2596 = vpop.f32.mrb[0].mxu0
        %2597 = vmatprep.mubr.bf16.mxu0 0
        %2598 = vmatmul.mubr.bf16.gmra.mrb[0].mxu0 %v2495
        %v2599 = vpop.f32.mrb[0].mxu0
        %v2600 = vadd.f32 0.0, %v2599
        %v2601 = vpop.f32.mrb[0].mxu0
        %v2602 = vpop.f32.mrb[0].mxu0
        %v2603 = vadd.f32 0.0, %v2602
        %v2604 = vpop.f32.mrb[0].mxu0
        %2605 = vmatprep.mubr.bf16.mxu0 0
        %2606 = vmatmul.mubr.bf16.gmra.mrb[0].mxu0 %v2496
        %v2607 = vpop.f32.mrb[0].mxu0
        %v2608 = vadd.f32 0.0, %v2607
        %v2609 = vpop.f32.mrb[0].mxu0
        %v2610 = vpop.f32.mrb[0].mxu0
        %v2611 = vadd.f32 0.0, %v2610
        %v2612 = vpop.f32.mrb[0].mxu0
        %2613 = vdwg.mxu0
        %v2614 = vadd.f32 %v2405, %v2584
        %v2615 = vadd.f32 %v2406, %v2587
        %v2616 = vadd.f32 %v2407, %v2592
        %v2617 = vadd.f32 %v2408, %v2595
        %v2618 = vadd.f32 %v2409, %v2600
        %v2619 = vadd.f32 %v2410, %v2603
        %v2620 = vadd.f32 %v2411, %v2608
        %v2621 = vadd.f32 %v2412, %v2611
        %v2622 = vld [vmem:[%s4] sm:$0x1]
        %v2624 = vlaneseq
        %v2625 = vshrl.u32 %v2624, 7
        %v2626 = vsub.s32 0, %v2625
        %v2627 = vrot.slane %v2622, %v2626
        %v2629 = vadd.f32 %v2614, %v2627
        %v2630 = vadd.f32 %v2615, %v2627
        %v2631 = vadd.f32 %v2616, %v2627
        %v2632 = vadd.f32 %v2617, %v2627
        %v2633 = vadd.f32 %v2618, %v2627
        %v2634 = vadd.f32 %v2619, %v2627
        %v2635 = vadd.f32 %v2620, %v2627
        %v2636 = vadd.f32 %v2621, %v2627
        %v2637 = vmax.f32 %v2629, 0.0
        %v2638 = vmax.f32 %v2630, 0.0
        %v2639 = vmax.f32 %v2631, 0.0
        %v2640 = vmax.f32 %v2632, 0.0
        %v2641 = vmax.f32 %v2633, 0.0
        %v2642 = vmax.f32 %v2634, 0.0
        %v2643 = vmax.f32 %v2635, 0.0
        %v2644 = vmax.f32 %v2636, 0.0
        %v2645 = vpack.c.bf16 %v2638, %v2637
        %v2646 = vpack.c.bf16 %v2640, %v2639
        %v2647 = vpack.c.bf16 %v2642, %v2641
        %v2648 = vpack.c.bf16 %v2644, %v2643
        %v2649 = vld [vmem:[%s5] sm:$0xf]
        %v2650 = vld [vmem:[%s5 + $0x4] sm:$0xf]
        %v2651 = vld [vmem:[%s5 + $0x8] sm:$0xf]
        %v2652 = vld [vmem:[%s5 + $0xc] sm:$0xf]
        %v2653 = vld [vmem:[%s5 + $0x10] sm:$0xf]
        %v2654 = vld [vmem:[%s5 + $0x14] sm:$0xf]
        %v2655 = vld [vmem:[%s5 + $0x18] sm:$0xf]
        %v2656 = vld [vmem:[%s5 + $0x1c] sm:$0xf]
        %v2657 = vld [vmem:[%s5 + $0x20] sm:$0xf]
        %v2658 = vld [vmem:[%s5 + $0x24] sm:$0xf]
        %v2659 = vld [vmem:[%s5 + $0x28] sm:$0xf]
        %v2660 = vld [vmem:[%s5 + $0x2c] sm:$0xf]
        %v2661 = vld [vmem:[%s5 + $0x30] sm:$0xf]
        %v2662 = vld [vmem:[%s5 + $0x34] sm:$0xf]
        %v2663 = vld [vmem:[%s5 + $0x38] sm:$0xf]
        %v2664 = vld [vmem:[%s5 + $0x3c] sm:$0xf]
        %v2665 = vld [vmem:[%s291] sm:$0xff]
        %v2666 = vld [vmem:[%s291 + $0x8] sm:$0xff]
        %v2667 = vld [vmem:[%s291 + $0x10] sm:$0xff]
        %v2668 = vld [vmem:[%s291 + $0x18] sm:$0xff]
        %v2669 = vld [vmem:[%s291 + $0x20] sm:$0xff]
        %v2670 = vld [vmem:[%s291 + $0x28] sm:$0xff]
        %v2671 = vld [vmem:[%s291 + $0x30] sm:$0xff]
        %v2672 = vld [vmem:[%s291 + $0x38] sm:$0xff]
        %v2673 = vld [vmem:[%s6] sm:$0x1]
        %v2675 = vlaneseq
        %v2676 = vshrl.u32 %v2675, 7
        %v2677 = vsub.s32 0, %v2676
        %v2678 = vrot.slane %v2673, %v2677
        %v2696 = vunpack.c.l.b16 %v2649
        %v2697 = vunpack.c.l.b16 %v2650
        %v2698 = vunpack.c.l.b16 %v2651
        %v2699 = vunpack.c.l.b16 %v2652
        %v2700 = vunpack.c.l.b16 %v2653
        %v2701 = vunpack.c.l.b16 %v2654
        %v2702 = vunpack.c.l.b16 %v2655
        %v2703 = vunpack.c.l.b16 %v2656
        %v2704 = vunpack.c.l.b16 %v2657
        %v2705 = vunpack.c.l.b16 %v2658
        %v2706 = vunpack.c.l.b16 %v2659
        %v2707 = vunpack.c.l.b16 %v2660
        %v2708 = vunpack.c.l.b16 %v2661
        %v2709 = vunpack.c.l.b16 %v2662
        %v2710 = vunpack.c.l.b16 %v2663
        %v2711 = vunpack.c.l.b16 %v2664
        %v2712 = vpack.c.b16 %v2697, %v2696
        %v2713 = vpack.c.b16 %v2699, %v2698
        %v2714 = vpack.c.b16 %v2701, %v2700
        %v2715 = vpack.c.b16 %v2703, %v2702
        %v2716 = vpack.c.b16 %v2705, %v2704
        %v2717 = vpack.c.b16 %v2707, %v2706
        %v2718 = vpack.c.b16 %v2709, %v2708
        %v2719 = vpack.c.b16 %v2711, %v2710
        %2728 = vmatprep.subr.bf16.mxu0 0
        %2729 = vmatpush1.bf16.msra.mxu0 %v2712
        %2730 = vmatprep.subr.bf16.mxu0 0
        %2731 = vmatpush1.bf16.msra.mxu0 %v2713
        %2732 = vmatprep.subr.bf16.mxu0 0
        %2733 = vmatpush1.bf16.msra.mxu0 %v2714
        %2734 = vmatprep.subr.bf16.mxu0 0
        %2735 = vmatpush1.bf16.msra.mxu0 %v2715
        %2736 = vmatprep.subr.bf16.mxu0 0
        %2737 = vmatpush1.bf16.msra.mxu0 %v2716
        %2738 = vmatprep.subr.bf16.mxu0 0
        %2739 = vmatpush1.bf16.msra.mxu0 %v2717
        %2740 = vmatprep.subr.bf16.mxu0 0
        %2741 = vmatpush1.bf16.msra.mxu0 %v2718
        %2742 = vmatprep.subr.bf16.mxu0 0
        %2743 = vmatpush1.bf16.msra.mxu0 %v2719
        %2744 = vmatprep.subr.bf16.mxu0 0
        %2745 = vmatpush1.bf16.msra.mxu0 0
        %2746 = vmatprep.subr.bf16.mxu0 0
        %2747 = vmatpush1.bf16.msra.mxu0 0
        %2748 = vmatprep.subr.bf16.mxu0 0
        %2749 = vmatpush1.bf16.msra.mxu0 0
        %2750 = vmatprep.subr.bf16.mxu0 0
        %2751 = vmatpush1.bf16.msra.mxu0 0
        %2752 = vmatprep.subr.bf16.mxu0 0
        %2753 = vmatpush1.bf16.msra.mxu0 0
        %2754 = vmatprep.subr.bf16.mxu0 0
        %2755 = vmatpush1.bf16.msra.mxu0 0
        %2756 = vmatprep.subr.bf16.mxu0 0
        %2757 = vmatpush1.bf16.msra.mxu0 0
        %2758 = vmatprep.subr.bf16.mxu0 0
        %2759 = vmatpush1.bf16.msra.mxu0 0
        %2760 = vmatprep.mubr.bf16.mxu0 0
        %2761 = vmatmul.mubr.bf16.gmra.mrb[0].mxu0 %v2645
        %v2762 = vpop.f32.mrb[0].mxu0
        %v2763 = vadd.f32 %v2678, %v2762
        %v2764 = vpop.f32.mrb[0].mxu0
        %v2765 = vpop.f32.mrb[0].mxu0
        %v2766 = vadd.f32 %v2678, %v2765
        %v2767 = vpop.f32.mrb[0].mxu0
        %2768 = vmatprep.mubr.bf16.mxu0 0
        %2769 = vmatmul.mubr.bf16.gmra.mrb[0].mxu0 %v2646
        %v2770 = vpop.f32.mrb[0].mxu0
        %v2771 = vadd.f32 %v2678, %v2770
        %v2772 = vpop.f32.mrb[0].mxu0
        %v2773 = vpop.f32.mrb[0].mxu0
        %v2774 = vadd.f32 %v2678, %v2773
        %v2775 = vpop.f32.mrb[0].mxu0
        %2776 = vmatprep.mubr.bf16.mxu0 0
        %2777 = vmatmul.mubr.bf16.gmra.mrb[0].mxu0 %v2647
        %v2778 = vpop.f32.mrb[0].mxu0
        %v2779 = vadd.f32 %v2678, %v2778
        %v2780 = vpop.f32.mrb[0].mxu0
        %v2781 = vpop.f32.mrb[0].mxu0
        %v2782 = vadd.f32 %v2678, %v2781
        %v2783 = vpop.f32.mrb[0].mxu0
        %2784 = vmatprep.mubr.bf16.mxu0 0
        %2785 = vmatmul.mubr.bf16.gmra.mrb[0].mxu0 %v2648
        %v2786 = vpop.f32.mrb[0].mxu0
        %v2787 = vadd.f32 %v2678, %v2786
        %v2788 = vpop.f32.mrb[0].mxu0
        %v2789 = vpop.f32.mrb[0].mxu0
        %v2790 = vadd.f32 %v2678, %v2789
        %v2791 = vpop.f32.mrb[0].mxu0
        %2792 = vdwg.mxu0
        %v2793 = vadd.f32 %v2763, %v2665
        %v2794 = vadd.f32 %v2766, %v2666
        %v2795 = vadd.f32 %v2771, %v2667
        %v2796 = vadd.f32 %v2774, %v2668
        %v2797 = vadd.f32 %v2779, %v2669
        %v2798 = vadd.f32 %v2782, %v2670
        %v2799 = vadd.f32 %v2787, %v2671
        %v2800 = vadd.f32 %v2790, %v2672
        %v2801 = vmax.f32 %v2793, 0.0
        %v2802 = vmax.f32 %v2794, 0.0
        %v2803 = vmax.f32 %v2795, 0.0
        %v2804 = vmax.f32 %v2796, 0.0
        %v2805 = vmax.f32 %v2797, 0.0
        %v2806 = vmax.f32 %v2798, 0.0
        %v2807 = vmax.f32 %v2799, 0.0
        %v2808 = vmax.f32 %v2800, 0.0
        %2809 = vst [vmem:[%s286] sm:$0xff] %v2801
        %2810 = vst [vmem:[%s286 + $0x8] sm:$0xff] %v2802
        %2811 = vst [vmem:[%s286 + $0x10] sm:$0xff] %v2803
        %2812 = vst [vmem:[%s286 + $0x18] sm:$0xff] %v2804
        %2813 = vst [vmem:[%s286 + $0x20] sm:$0xff] %v2805
        %2814 = vst [vmem:[%s286 + $0x28] sm:$0xff] %v2806
        %2815 = vst [vmem:[%s286 + $0x30] sm:$0xff] %v2807
        %2816 = vst [vmem:[%s286 + $0x38] sm:$0xff] %v2808
        %s2817 = sand.u32 %s182, 1
        %s2818 = scalar_lea.sflag [#allocation5], %s2817
        %s2819 = sand.u32 %s182, 1
        %s2820 = smul.addr %s2819, 64
        %s2821 = scalar_lea.vmem [#allocation6], %s2820
        // Predicated region
        $region53: #{bottleneck_block.1} parent=47 // pred_check
          %p2822 = pneg %p192
        $region54: #{bottleneck_block.1} parent=47 // pred_check_branch
          %2824 = sbr.rel (%p2822) target = $region56
        $region55: #{bottleneck_block.1} parent=47 // pred_region
          %s2826 = ssub.s32 1024, 1024
          %2827 = vsyncadd %s2818, %s2826
          %s2828 = smul.addr %s22, 8
          %s2829 = smul.addr %s2828, 128
          %s2830 = scalar_lea.hbm %s7, %s2829
          %s2831 = sshll.u32 %s2821, 4
          %s2832 = int_to_ptr.vmem [resolvable:$true] %s2831
          %2837 = dma.vmem_to_hbm [thread:$0]  %s2832, 1024, %s2830, %s2818, 128, 128, 8
        $region56: #{bottleneck_block.1} parent=47 // pred_fallthru
          _
      $region48: #{bottleneck_block.1} parent=5 // pred_fallthru
        _
      %p2838 = scmp.le.s32.totalorder 2, %s17
      // Predicated region
      $region57: #{bottleneck_block.1} parent=5 // pred_check
        %p2839 = pneg %p2838
      $region58: #{bottleneck_block.1} parent=5 // pred_check_branch
        %2841 = sbr.rel (%p2839) target = $region60
      $region59: #{bottleneck_block.1} parent=5 // pred_region
        %s2842 = ssub.s32 %s17, 2
        // Predicated region
        $region61: #{bottleneck_block.1} parent=59 // pred_check
          %p2843 = pneg %p198
        $region62: #{bottleneck_block.1} parent=59 // pred_check_branch
          %2845 = sbr.rel (%p2843) target = $region64
        $region63: #{bottleneck_block.1} parent=59 // pred_region
          %s2846 = sand.u32 %s183, 1
          %s2847 = scalar_lea.sflag [#allocation5], %s2846
          %s2848 = sand.u32 %s183, 1
          %s2849 = smul.addr %s2848, 64
          %s2850 = scalar_lea.vmem [#allocation6], %s2849
          %2851 = dma.done %s2847, 1024
        $region64: #{bottleneck_block.1} parent=59 // pred_fallthru
          _
      $region60: #{bottleneck_block.1} parent=5 // pred_fallthru
        _
    $region6: #{bottleneck_block.1} parent=1 // loop_footer
      %s21 = sadd.s32 1, %s17
    $region7: #{bottleneck_block.1} parent=1 // loop_footer_branch
      %16 = sbr.rel target = $region3
    $region8: #{bottleneck_block.1} parent=1 // loop_exit
      _
    %2852 = vsyncpa [#allocation4], 1
    %s2853 = scalar_lea.sflag [#allocation4], 1
    %2854 = vsyncpa %s2853, 1
    %2855 = vsyncpa [#allocation5], 1
    %s2856 = scalar_lea.sflag [#allocation5], 1
    %2857 = vsyncpa %s2856, 1

</llo_original>
